<compile_context>
chip_gen: v5e
topology: v5e:2x2
jax: 0.10.0
libtpu: 0.0.40
codegen_flags: <defaults>
</compile_context>

<pallas_src>
import functools

import jax
import jax.numpy as jnp
from jax import lax
from jax.experimental import pallas as pl
from jax.experimental.pallas import tpu as pltpu

NEG_SLOPE = 0.01  # torch.nn.LeakyReLU default negative_slope


def _leaky(x):
    return jnp.where(x >= 0, x, NEG_SLOPE * x)


# --------------------------------------------------------------------------
# Kernel 1: fused hyper-network (fc -> conv1 -> conv2 -> conv3, + base weight)
#
# All arrays are whole-array VMEM refs (grid-less call).  Rows are (b, tap)
# pairs (B*k*k of them), so every stage is a plain 2-D matmul with a
# row-broadcast bias -- no in-kernel reshape / transpose is needed.
# --------------------------------------------------------------------------
def _weightgen_kernel(l2_ref, r2_ref, fcb_ref, w1t_ref, b1_ref, w2t_ref,
                      b2_ref, w3t_ref, b3_ref, base_ref, o_ref):
    z = _leaky(jnp.dot(l2_ref[...], r2_ref[...],
                       preferred_element_type=jnp.float32) + fcb_ref[...])
    c1 = _leaky(jnp.dot(z, w1t_ref[...],
                        preferred_element_type=jnp.float32) + b1_ref[...])
    c2 = _leaky(jnp.dot(c1, w2t_ref[...],
                        preferred_element_type=jnp.float32) + b2_ref[...])
    kf = (jnp.dot(c2, w3t_ref[...], preferred_element_type=jnp.float32)
          + b3_ref[...] + base_ref[...])
    o_ref[...] = kf.astype(o_ref.dtype)


# --------------------------------------------------------------------------
# Kernel 2: per-batch dynamic conv2d, tiled over output rows.
#
#   w_ref : (1, Cout, k*k*Cin_p)       fused taps (resident across row tiles)
#   b_ref : (Cout, 1)                  conv bias (f32)
#   x_ref : (1, s, Hp_pad, Cin_p, Wq)  phase-decomposed padded image (resident,
#                                      single-buffered: index only changes on b)
#   o_ref : (1, t_oh, Cout, Wout)      output row-block (Wout lane-dense)
#
# Per output row: ONE (Cout, kk*Cin_p) @ (kk*Cin_p, Wout) MXU dot.  The RHS is
# built from tile-aligned (Cin_p, Wout) pieces; pieces and row slabs are cached
# across the statically unrolled t_oh rows (rolling-window reuse).
# --------------------------------------------------------------------------
def _conv_rows_kernel(w_ref, b_ref, x_ref, o_ref, *, k, s, d, t_oh, wout):
    cout = o_ref.shape[2]
    in_base = pl.program_id(1) * (t_oh * s)        # first input row of the tile

    wf = w_ref[0]                                  # (Cout, k*k*Cin_p), hoisted
    bias_tile = jnp.broadcast_to(b_ref[...], (cout, wout)).astype(jnp.float32)

    # Static column phase / lane offset per kw.
    phq = [((kw * d) % s, (kw * d) // s) for kw in range(k)]

    slab_cache = {}    # (phase, rel_row) -> (Cin_p, Wq) row slab
    piece_cache = {}   # (rel_row, kw)    -> (Cin_p, Wout) shifted slice

    def piece(rel, kw):
        key = (rel, kw)
        if key not in piece_cache:
            ph, q0 = phq[kw]
            skey = (ph, rel)
            if skey not in slab_cache:
                slab_cache[skey] = x_ref[0, ph, pl.ds(in_base + rel, 1), :, :][0]
            piece_cache[key] = slab_cache[skey][:, q0:q0 + wout]
        return piece_cache[key]

    # Static unroll keeps slab/piece reuse trivial; t_oh is capped at 16.
    for r in range(t_oh):
        rhs = jnp.concatenate(
            [piece(r * s + kh * d, kw) for kh in range(k) for kw in range(k)],
            axis=0)                                # (k*k*Cin_p, Wout)
        acc = bias_tile + jnp.dot(wf, rhs, preferred_element_type=jnp.float32)
        o_ref[0, r, :, :] = acc.astype(o_ref.dtype)


# ------------------------------- module -----------------------------------
class PseudoHyperConv2dPallas:
    def __init__(self, h_elements, in_channels, out_channels, kernel_size,
                 stride=1, padding=0, dilation=1, groups=1, bias=True,
                 padding_mode="zeros", key=None, dtype=jnp.float32,
                 conv_compute_dtype=None):
        assert groups == 1              # TODO(synk): grouped conv not implemented
        assert padding_mode == "zeros"  # TODO(synk): reflect/replicate/circular
        if key is None:
            key = jax.random.PRNGKey(0)
        self.h_elements = h_elements
        self.in_channels = in_channels
        self.out_channels = out_channels
        self.kernel_size = kernel_size
        self.stride = stride
        self.padding = padding
        self.dilation = dilation
        self.groups = groups
        self.conv_compute_dtype = conv_compute_dtype   # e.g. bf16 on v6e/v7x

        k = kernel_size
        kk = k * k
        M1 = 16 * kk
        n_ch = out_channels * (in_channels // groups)
        keys = jax.random.split(key, 10)

        def kaiming(kk_, shape, fan_in):
            return jax.random.normal(kk_, shape, dtype) * (2.0 / fan_in) ** 0.5

        def unif(kk_, shape, fan_in):
            b = 1.0 / fan_in ** 0.5
            return jax.random.uniform(kk_, shape, dtype, -b, b)

        # HyperConv2dKernelNet params (1x1 conv weights stored as 2D matrices)
        self.fc_w = kaiming(keys[0], (M1, h_elements), h_elements)
        self.fc_b = unif(keys[1], (M1,), h_elements)
        self.w1 = kaiming(keys[2], (32, 16), 16)
        self.b1 = unif(keys[3], (32,), 16)
        self.w2 = kaiming(keys[4], (32, 32), 32)
        self.b2 = unif(keys[5], (32,), 32)
        self.w3 = (jax.random.normal(keys[6], (n_ch, 32), dtype)
                   * (2.0 / (32 + n_ch)) ** 0.5)            # xavier_normal
        self.b3 = unif(keys[7], (n_ch,), 32)

        # Pseudo base weight + bias
        fan_in_w = (in_channels // groups) * kk
        self.base_w = kaiming(keys[8],
                              (out_channels, in_channels // groups, k, k),
                              fan_in_w)
        if bias:
            self.bias = unif(keys[9], (out_channels,), fan_in_w)
        else:
            self.bias = jnp.zeros((out_channels,), dtype)

        # ---- one-time static re-layouts of the hyper-net parameters --------
        # R2[e*kk + j, c]  = fc_w[c*kk + j, e]
        self._r2 = (self.fc_w.reshape(16, kk, h_elements)
                    .transpose(2, 1, 0).reshape(h_elements * kk, 16))
        self._fcb_tap = self.fc_b.reshape(16, kk).T                 # (kk, 16)
        self._w1t, self._b1r = self.w1.T, self.b1.reshape(1, -1)
        self._w2t, self._b2r = self.w2.T, self.b2.reshape(1, -1)
        self._w3t, self._b3r = self.w3.T, self.b3.reshape(1, -1)
        # base_tap[kh*k+kw, co*Cin_g+ci] = base_w[co, ci, kh, kw]
        self._base_tap = self.base_w.transpose(2, 3, 0, 1).reshape(kk, n_ch)
        self._eye_kk = jnp.eye(kk, dtype=dtype)

    @staticmethod
    def _vmem_cap_bytes():
        try:
            cap = int(pltpu.get_tpu_info().vmem_capacity_bytes)
            return max(cap, 48 << 20)
        except Exception:
            return 64 << 20            # conservative fallback (v7x physical VMEM)

    def __call__(self, x, h):
        B, Cin, H, W = x.shape
        k, s, p, d = self.kernel_size, self.stride, self.padding, self.dilation
        Cout = self.out_channels
        kk = k * k
        Cin_g = Cin // self.groups
        n_ch = Cout * Cin_g
        Hout = (H + 2 * p - d * (k - 1) - 1) // s + 1
        Wout = (W + 2 * p - d * (k - 1) - 1) // s + 1
        dtype = x.dtype
        h_el = self.h_elements
        cdtype = self.conv_compute_dtype or dtype

        # ===== call 1: fused hyper-network (single batched launch) ==========
        # L2[b*kk+j, e*kk+j'] = h[b,e]*delta(j,j') lifts the fc into the same
        # (B*kk)-row layout as the 1x1 chain, so the whole hyper-net is four
        # plain 2-D matmuls in one kernel (no per-batch grid, no HBM z bounce).
        l2 = (h[:, None, :, None] * self._eye_kk[None, :, None, :]) \
            .reshape(B * kk, h_el * kk).astype(dtype)
        fcb = jnp.tile(self._fcb_tap, (B, 1))                       # (B*kk, 16)
        base_row = jnp.tile(self._base_tap, (B, 1))                 # (B*kk, n_ch)
        kf = pl.pallas_call(
            _weightgen_kernel,
            out_shape=jax.ShapeDtypeStruct((B * kk, n_ch), dtype),
        )(l2, self._r2, fcb, self._w1t, self._b1r, self._w2t, self._b2r,
          self._w3t, self._b3r, base_row)

        # ===== fused conv weights: (B, Cout, kk*Cin_p) ======================
        # Taps are stacked along the contraction dim so the conv kernel does
        # ONE dot with K = kk*Cin_p per output row.  Channels are sublane-
        # padded (zeros) so every in-kernel slice/concat is tile-aligned.
        Cin_p = -(-Cin_g // 8) * 8
        wt = kf.reshape(B, kk, Cout, Cin_g)
        if Cin_p != Cin_g:
            wt = jnp.pad(wt, ((0, 0), (0, 0), (0, 0), (0, Cin_p - Cin_g)))
        wfused = (wt.transpose(0, 2, 1, 3)
                  .reshape(B, Cout, kk * Cin_p).astype(cdtype))
        bias_col = self.bias.reshape(Cout, 1).astype(jnp.float32)

        # ===== output-row tiling (non-divisor Hout handled by padding) ======
        t_oh = min(Hout, 16)
        n_t = pl.cdiv(Hout, t_oh)
        Hout_p = n_t * t_oh

        # ===== layout plumbing for the conv (no im2col materialization) =====
        Hp = H + 2 * p
        Wp = W + 2 * p
        Wq = -(-Wp // s)                                  # ceil(Wp / s)
        Hp_req = (Hout_p - 1) * s + (k - 1) * d + 1       # rows needed incl. overlap tile
        extra_h = max(0, Hp_req - Hp)
        Hp_pad = Hp + extra_h
        # Explicit bounds checks for the static lane/row slices in the kernel.
        assert ((k - 1) * d) // s + Wout <= Wq, "column phase slice out of range"
        assert (Hout_p - 1) * s + (k - 1) * d < Hp_pad, "row slice out of range"

        xpad = jnp.pad(x.astype(cdtype),
                       ((0, 0), (0, Cin_p - Cin_g),
                        (p, p + extra_h), (p, p + Wq * s - Wp)))
        # (B, s, Hp_pad, Cin_p, Wq): column phase-decomposition; the minor dims
        # are a (Cin_p, Wq) slab so every tap row is one contiguous aligned load.
        xph = (xpad.reshape(B, Cin_p, Hp_pad, Wq, s)
               .transpose(0, 4, 2, 1, 3))

        # ===== VMEM budget (chip-derived cap; x block is single-buffered) ===
        def _rup(v, m):
            return -(-v // m) * m
        itm = jnp.dtype(cdtype).itemsize
        oitm = jnp.dtype(dtype).itemsize
        sub_i = max(8, 32 // itm)
        sub_o = max(8, 32 // oitm)
        x_blk = s * Hp_pad * _rup(Cin_p, sub_i) * _rup(Wq, 128) * itm       # x1 (Buffered(1))
        w_blk = 2 * _rup(Cout, sub_i) * _rup(kk * Cin_p, 128) * itm
        o_blk = 2 * t_oh * _rup(Cout, sub_o) * _rup(Wout, 128) * oitm
        b_blk = 2 * 8 * 128 * 4
        need = x_blk + w_blk + o_blk + b_blk + (4 << 20)
        cap = self._vmem_cap_bytes()
        vmem_limit = int(min(max(need, 32 << 20), cap - (8 << 20)))

        kern = functools.partial(_conv_rows_kernel, k=k, s=s, d=d,
                                 t_oh=t_oh, wout=Wout)

        out_rows = pl.pallas_call(
            kern,
            out_shape=jax.ShapeDtypeStruct((B, Hout_p, Cout, Wout), dtype),
            grid_spec=pltpu.PrefetchScalarGridSpec(
                num_scalar_prefetch=0,
                grid=(B, n_t),
                in_specs=[
                    pl.BlockSpec((1, Cout, kk * Cin_p),
                                 lambda b, t: (b, 0, 0)),
                    pl.BlockSpec((Cout, 1), lambda b, t: (0, 0)),
                    # Whole per-batch image resident across the row axis;
                    # single-buffered since its block index only changes on b
                    # (halves the dominant VMEM consumer -> v7x 64 MiB safe).
                    pl.BlockSpec((1, s, Hp_pad, Cin_p, Wq),
                                 lambda b, t: (b, 0, 0, 0, 0),
                                 pipeline_mode=pl.Buffered(buffer_count=1)),
                ],
                out_specs=pl.BlockSpec((1, t_oh, Cout, Wout),
                                       lambda b, t: (b, t, 0, 0)),
            ),
            compiler_params=pltpu.CompilerParams(
                dimension_semantics=("parallel", "parallel"),
                vmem_limit_bytes=vmem_limit),
            cost_estimate=pl.CostEstimate(
                flops=2 * B * Cout * kk * Cin_p * Hout_p * Wout,
                transcendentals=0,
                bytes_accessed=int(xph.size * itm + wfused.size * itm
                                   + bias_col.size * 4
                                   + B * Hout_p * Cout * Wout * oitm)),
        )(wfused, bias_col, xph)

        # (B, Hout_p, Cout, Wout) -> drop overlap rows -> NCHW (layout plumbing).
        return out_rows[:, :Hout].transpose(0, 2, 1, 3)


# --------------------------- pure-JAX reference ----------------------------
def reference_forward(m, x, h):
    k, s, p, d = m.kernel_size, m.stride, m.padding, m.dilation
    Cout, Cin = m.out_channels, m.in_channels
    z = _leaky(h @ m.fc_w.T + m.fc_b)
    zr = z.reshape(-1, 16, k, k)
    c1 = _leaky(jnp.einsum('oc,bchw->bohw', m.w1, zr) + m.b1[None, :, None, None])
    c2 = _leaky(jnp.einsum('oc,bchw->bohw', m.w2, c1) + m.b2[None, :, None, None])
    kr = jnp.einsum('oc,bchw->bohw', m.w3, c2) + m.b3[None, :, None, None]
    outs = []
    for b in range(x.shape[0]):
        w = kr[b].reshape(Cout, Cin // m.groups, k, k) + m.base_w
        y = lax.conv_general_dilated(
            x[b:b + 1], w, window_strides=(s, s), padding=[(p, p), (p, p)],
            rhs_dilation=(d, d), feature_group_count=m.groups,
            dimension_numbers=('NCHW', 'OIHW', 'NCHW'))
        outs.append(y + m.bias[None, :, None, None])
    return jnp.concatenate(outs, axis=0)


if __name__ == "__main__":
    key = jax.random.PRNGKey(0)

    # (B, Cin, Cout, k, H, W, h_el, stride, padding, dilation, bias)
    configs = [
        (2, 4, 8, 3, 16, 16, 8, 1, 1, 1, True),    # original small config
        (2, 4, 8, 3, 20, 20, 8, 2, 1, 1, True),    # stride 2 (phase path)
        (1, 3, 6, 3, 16, 16, 5, 1, 2, 2, False),   # dilation 2, no bias
        (2, 4, 8, 3, 46, 46, 8, 2, 1, 1, True),    # multi-tile + overlap rows
    ]
    for i, (B, Cin, Cout, K, H, W, h_el, s, p, d, use_bias) in enumerate(configs):
        kx, khv, kp, key = jax.random.split(key, 4)
        mod = PseudoHyperConv2dPallas(h_el, Cin, Cout, K, stride=s, padding=p,
                                      dilation=d, bias=use_bias, key=kp)
        x = jax.random.normal(kx, (B, Cin, H, W), jnp.float32)
        hvec = jax.random.normal(khv, (B, h_el), jnp.float32)

        fwd = jax.jit(lambda xx, hh, m=mod: m(xx, hh))
        y = jax.block_until_ready(fwd(x, hvec))
        y_ref = reference_forward(mod, x, hvec)

        assert y.shape == y_ref.shape, (i, y.shape, y_ref.shape)
        err = float(jnp.max(jnp.abs(y - y_ref)))
        assert jnp.allclose(y, y_ref, atol=1e-2, rtol=1e-2), (i, err)

    print("KERNEL_OK")
</pallas_src>

<mosaic_0001>
module attributes {stable_mosaic.version = 11 : i64} {
  func.func @_weightgen_kernel(%arg0: memref<18x72xf32, #tpu.memory_space<vmem>>, %arg1: memref<72x16xf32, #tpu.memory_space<vmem>>, %arg2: memref<18x16xf32, #tpu.memory_space<vmem>>, %arg3: memref<16x32xf32, #tpu.memory_space<vmem>>, %arg4: memref<1x32xf32, #tpu.memory_space<vmem>>, %arg5: memref<32x32xf32, #tpu.memory_space<vmem>>, %arg6: memref<1x32xf32, #tpu.memory_space<vmem>>, %arg7: memref<32x32xf32, #tpu.memory_space<vmem>>, %arg8: memref<1x32xf32, #tpu.memory_space<vmem>>, %arg9: memref<18x32xf32, #tpu.memory_space<vmem>>, %arg10: memref<18x32xf32, #tpu.memory_space<vmem>>) attributes {dimension_semantics = [], scalar_prefetch = 0 : i64, scratch_operands = 0 : i64, tpu.core_type = #tpu.core_type<tc>} {
    %c0 = arith.constant 0 : index
    %c0_0 = arith.constant 0 : index
    %0 = vector.load %arg0[%c0, %c0_0] : memref<18x72xf32, #tpu.memory_space<vmem>>, vector<18x72xf32>
    %c0_1 = arith.constant 0 : index
    %c0_2 = arith.constant 0 : index
    %1 = vector.load %arg1[%c0_1, %c0_2] : memref<72x16xf32, #tpu.memory_space<vmem>>, vector<72x16xf32>
    %cst = arith.constant dense<0.000000e+00> : vector<18x16xf32>
    %2 = tpu.matmul %0, %1, %cst {dimension_numbers = #tpu.dot_dimension_numbers<[1], [0], [0], [1], [0, 0, 1, 1], [], []>} : vector<18x72xf32>, vector<72x16xf32>, vector<18x16xf32> -> vector<18x16xf32>
    %c0_3 = arith.constant 0 : index
    %c0_4 = arith.constant 0 : index
    %3 = vector.load %arg2[%c0_3, %c0_4] : memref<18x16xf32, #tpu.memory_space<vmem>>, vector<18x16xf32>
    %4 = arith.addf %2, %3 : vector<18x16xf32>
    %cst_5 = arith.constant 0.000000e+00 : f32
    %5 = vector.broadcast %cst_5 : f32 to vector<18x16xf32>
    %6 = arith.cmpf oge, %4, %5 : vector<18x16xf32>
    %cst_6 = arith.constant 0.00999999977 : f32
    %7 = vector.broadcast %cst_6 : f32 to vector<18x16xf32>
    %8 = arith.mulf %7, %4 : vector<18x16xf32>
    %9 = arith.select %6, %4, %8 : vector<18x16xi1>, vector<18x16xf32>
    %c0_7 = arith.constant 0 : index
    %c0_8 = arith.constant 0 : index
    %10 = vector.load %arg3[%c0_7, %c0_8] : memref<16x32xf32, #tpu.memory_space<vmem>>, vector<16x32xf32>
    %cst_9 = arith.constant dense<0.000000e+00> : vector<18x32xf32>
    %11 = tpu.matmul %9, %10, %cst_9 {dimension_numbers = #tpu.dot_dimension_numbers<[1], [0], [0], [1], [0, 0, 1, 1], [], []>} : vector<18x16xf32>, vector<16x32xf32>, vector<18x32xf32> -> vector<18x32xf32>
    %c0_10 = arith.constant 0 : index
    %c0_11 = arith.constant 0 : index
    %12 = vector.load %arg4[%c0_10, %c0_11] : memref<1x32xf32, #tpu.memory_space<vmem>>, vector<1x32xf32>
    %13 = vector.broadcast %12 : vector<1x32xf32> to vector<18x32xf32>
    %14 = arith.addf %11, %13 : vector<18x32xf32>
    %cst_12 = arith.constant 0.000000e+00 : f32
    %15 = vector.broadcast %cst_12 : f32 to vector<18x32xf32>
    %16 = arith.cmpf oge, %14, %15 : vector<18x32xf32>
    %cst_13 = arith.constant 0.00999999977 : f32
    %17 = vector.broadcast %cst_13 : f32 to vector<18x32xf32>
    %18 = arith.mulf %17, %14 : vector<18x32xf32>
    %19 = arith.select %16, %14, %18 : vector<18x32xi1>, vector<18x32xf32>
    %c0_14 = arith.constant 0 : index
    %c0_15 = arith.constant 0 : index
    %20 = vector.load %arg5[%c0_14, %c0_15] : memref<32x32xf32, #tpu.memory_space<vmem>>, vector<32x32xf32>
    %cst_16 = arith.constant dense<0.000000e+00> : vector<18x32xf32>
    %21 = tpu.matmul %19, %20, %cst_16 {dimension_numbers = #tpu.dot_dimension_numbers<[1], [0], [0], [1], [0, 0, 1, 1], [], []>} : vector<18x32xf32>, vector<32x32xf32>, vector<18x32xf32> -> vector<18x32xf32>
    %c0_17 = arith.constant 0 : index
    %c0_18 = arith.constant 0 : index
    %22 = vector.load %arg6[%c0_17, %c0_18] : memref<1x32xf32, #tpu.memory_space<vmem>>, vector<1x32xf32>
    %23 = vector.broadcast %22 : vector<1x32xf32> to vector<18x32xf32>
    %24 = arith.addf %21, %23 : vector<18x32xf32>
    %cst_19 = arith.constant 0.000000e+00 : f32
    %25 = vector.broadcast %cst_19 : f32 to vector<18x32xf32>
    %26 = arith.cmpf oge, %24, %25 : vector<18x32xf32>
    %cst_20 = arith.constant 0.00999999977 : f32
    %27 = vector.broadcast %cst_20 : f32 to vector<18x32xf32>
    %28 = arith.mulf %27, %24 : vector<18x32xf32>
    %29 = arith.select %26, %24, %28 : vector<18x32xi1>, vector<18x32xf32>
    %c0_21 = arith.constant 0 : index
    %c0_22 = arith.constant 0 : index
    %30 = vector.load %arg7[%c0_21, %c0_22] : memref<32x32xf32, #tpu.memory_space<vmem>>, vector<32x32xf32>
    %cst_23 = arith.constant dense<0.000000e+00> : vector<18x32xf32>
    %31 = tpu.matmul %29, %30, %cst_23 {dimension_numbers = #tpu.dot_dimension_numbers<[1], [0], [0], [1], [0, 0, 1, 1], [], []>} : vector<18x32xf32>, vector<32x32xf32>, vector<18x32xf32> -> vector<18x32xf32>
    %c0_24 = arith.constant 0 : index
    %c0_25 = arith.constant 0 : index
    %32 = vector.load %arg8[%c0_24, %c0_25] : memref<1x32xf32, #tpu.memory_space<vmem>>, vector<1x32xf32>
    %33 = vector.broadcast %32 : vector<1x32xf32> to vector<18x32xf32>
    %34 = arith.addf %31, %33 : vector<18x32xf32>
    %c0_26 = arith.constant 0 : index
    %c0_27 = arith.constant 0 : index
    %35 = vector.load %arg9[%c0_26, %c0_27] : memref<18x32xf32, #tpu.memory_space<vmem>>, vector<18x32xf32>
    %36 = arith.addf %34, %35 : vector<18x32xf32>
    %c0_28 = arith.constant 0 : index
    %c0_29 = arith.constant 0 : index
    %37 = vector.load %arg10[%c0_28, %c0_29] : memref<18x32xf32, #tpu.memory_space<vmem>>, vector<18x32xf32>
    tpu.vector_store %arg10[%c0_28, %c0_29], %36 {strides = array<i32>} : memref<18x32xf32, #tpu.memory_space<vmem>>, vector<18x32xf32>,
    return
  }
}

module attributes {stable_mosaic.version = 11 : i64} {
  func.func @_conv_rows_kernel(%arg0: i32, %arg1: i32, %arg2: memref<1x8x72xf32, #tpu.memory_space<vmem>>, %arg3: memref<8x1xf32, #tpu.memory_space<vmem>>, %arg4: memref<1x1x18x8x18xf32, #tpu.memory_space<vmem>>, %arg5: memref<1x16x8x16xf32, #tpu.memory_space<vmem>>) attributes {dimension_semantics = [#tpu.dimension_semantics<parallel>, #tpu.dimension_semantics<parallel>], iteration_bounds = array<i64: 2, 1>, scalar_prefetch = 0 : i64, scratch_operands = 0 : i64, tpu.core_type = #tpu.core_type<tc>, window_params = [{transform_indices = @transform_0, window_bounds = array<i64: 1, 8, 72>}, {pipeline_mode = #tpu.pipeline_mode<synchronous>, transform_indices = @transform_1, window_bounds = array<i64: 8, 1>}, {pipeline_mode = #tpu.pipeline_mode<synchronous>, transform_indices = @transform_2, window_bounds = array<i64: 1, 1, 18, 8, 18>}, {transform_indices = @transform_3, window_bounds = array<i64: 1, 16, 8, 16>}]} {
    %c16_i32 = arith.constant 16 : i32
    %0 = arith.muli %arg1, %c16_i32 : i32
    %c0 = arith.constant 0 : index
    %c0_0 = arith.constant 0 : index
    %c0_1 = arith.constant 0 : index
    %1 = vector.load %arg2[%c0, %c0_0, %c0_1] : memref<1x8x72xf32, #tpu.memory_space<vmem>>, vector<1x8x72xf32>
    %2 = vector.shape_cast %1 : vector<1x8x72xf32> to vector<8x72xf32>
    %c0_2 = arith.constant 0 : index
    %c0_3 = arith.constant 0 : index
    %3 = vector.load %arg3[%c0_2, %c0_3] : memref<8x1xf32, #tpu.memory_space<vmem>>, vector<8x1xf32>
    %4 = vector.shape_cast %3 : vector<8x1xf32> to vector<8x1xf32>
    %5 = vector.broadcast %4 : vector<8x1xf32> to vector<8x16xf32>
    %c0_i32 = arith.constant 0 : i32
    %6 = arith.addi %0, %c0_i32 : i32
    %c0_4 = arith.constant 0 : index
    %c0_5 = arith.constant 0 : index
    %7 = arith.index_cast %6 : i32 to index
    %c0_6 = arith.constant 0 : index
    %c0_7 = arith.constant 0 : index
    %8 = vector.load %arg4[%c0_4, %c0_5, %7, %c0_6, %c0_7] : memref<1x1x18x8x18xf32, #tpu.memory_space<vmem>>, vector<1x1x1x8x18xf32>
    %9 = vector.shape_cast %8 : vector<1x1x1x8x18xf32> to vector<1x8x18xf32>
    %10 = vector.shape_cast %9 : vector<1x8x18xf32> to vector<8x18xf32>
    %11 = vector.extract_strided_slice %10 {offsets = [0, 0], sizes = [8, 16], strides = [1, 1]} : vector<8x18xf32> to vector<8x16xf32>
    %12 = vector.extract_strided_slice %10 {offsets = [0, 1], sizes = [8, 16], strides = [1, 1]} : vector<8x18xf32> to vector<8x16xf32>
    %13 = vector.extract_strided_slice %10 {offsets = [0, 2], sizes = [8, 16], strides = [1, 1]} : vector<8x18xf32> to vector<8x16xf32>
    %c1_i32 = arith.constant 1 : i32
    %14 = arith.addi %0, %c1_i32 : i32
    %c0_8 = arith.constant 0 : index
    %c0_9 = arith.constant 0 : index
    %15 = arith.index_cast %14 : i32 to index
    %c0_10 = arith.constant 0 : index
    %c0_11 = arith.constant 0 : index
    %16 = vector.load %arg4[%c0_8, %c0_9, %15, %c0_10, %c0_11] : memref<1x1x18x8x18xf32, #tpu.memory_space<vmem>>, vector<1x1x1x8x18xf32>
    %17 = vector.shape_cast %16 : vector<1x1x1x8x18xf32> to vector<1x8x18xf32>
    %18 = vector.shape_cast %17 : vector<1x8x18xf32> to vector<8x18xf32>
    %19 = vector.extract_strided_slice %18 {offsets = [0, 0], sizes = [8, 16], strides = [1, 1]} : vector<8x18xf32> to vector<8x16xf32>
    %20 = vector.extract_strided_slice %18 {offsets = [0, 1], sizes = [8, 16], strides = [1, 1]} : vector<8x18xf32> to vector<8x16xf32>
    %21 = vector.extract_strided_slice %18 {offsets = [0, 2], sizes = [8, 16], strides = [1, 1]} : vector<8x18xf32> to vector<8x16xf32>
    %c2_i32 = arith.constant 2 : i32
    %22 = arith.addi %0, %c2_i32 : i32
    %c0_12 = arith.constant 0 : index
    %c0_13 = arith.constant 0 : index
    %23 = arith.index_cast %22 : i32 to index
    %c0_14 = arith.constant 0 : index
    %c0_15 = arith.constant 0 : index
    %24 = vector.load %arg4[%c0_12, %c0_13, %23, %c0_14, %c0_15] : memref<1x1x18x8x18xf32, #tpu.memory_space<vmem>>, vector<1x1x1x8x18xf32>
    %25 = vector.shape_cast %24 : vector<1x1x1x8x18xf32> to vector<1x8x18xf32>
    %26 = vector.shape_cast %25 : vector<1x8x18xf32> to vector<8x18xf32>
    %27 = vector.extract_strided_slice %26 {offsets = [0, 0], sizes = [8, 16], strides = [1, 1]} : vector<8x18xf32> to vector<8x16xf32>
    %28 = vector.extract_strided_slice %26 {offsets = [0, 1], sizes = [8, 16], strides = [1, 1]} : vector<8x18xf32> to vector<8x16xf32>
    %29 = vector.extract_strided_slice %26 {offsets = [0, 2], sizes = [8, 16], strides = [1, 1]} : vector<8x18xf32> to vector<8x16xf32>
    %30 = tpu.concatenate %11, %12, %13, %19, %20, %21, %27, %28, %29 in 0 : vector<8x16xf32>, vector<8x16xf32>, vector<8x16xf32>, vector<8x16xf32>, vector<8x16xf32>, vector<8x16xf32>, vector<8x16xf32>, vector<8x16xf32>, vector<8x16xf32> -> vector<72x16xf32>
    %cst = arith.constant dense<0.000000e+00> : vector<8x16xf32>
    %31 = tpu.matmul %2, %30, %cst {dimension_numbers = #tpu.dot_dimension_numbers<[1], [0], [0], [1], [0, 0, 1, 1], [], []>} : vector<8x72xf32>, vector<72x16xf32>, vector<8x16xf32> -> vector<8x16xf32>
    %32 = arith.addf %5, %31 : vector<8x16xf32>
    %c0_16 = arith.constant 0 : index
    %c0_17 = arith.constant 0 : index
    %c0_18 = arith.constant 0 : index
    %c0_19 = arith.constant 0 : index
    %33 = vector.load %arg5[%c0_16, %c0_17, %c0_18, %c0_19] : memref<1x16x8x16xf32, #tpu.memory_space<vmem>>, vector<1x1x8x16xf32>
    %34 = vector.shape_cast %33 : vector<1x1x8x16xf32> to vector<8x16xf32>
    %35 = vector.shape_cast %32 : vector<8x16xf32> to vector<1x1x8x16xf32>
    tpu.vector_store %arg5[%c0_16, %c0_17, %c0_18, %c0_19], %35 {strides = array<i32>} : memref<1x16x8x16xf32, #tpu.memory_space<vmem>>, vector<1x1x8x16xf32>,
    %c3_i32 = arith.constant 3 : i32
    %36 = arith.addi %0, %c3_i32 : i32
    %c0_20 = arith.constant 0 : index
    %c0_21 = arith.constant 0 : index
    %37 = arith.index_cast %36 : i32 to index
    %c0_22 = arith.constant 0 : index
    %c0_23 = arith.constant 0 : index
    %38 = vector.load %arg4[%c0_20, %c0_21, %37, %c0_22, %c0_23] : memref<1x1x18x8x18xf32, #tpu.memory_space<vmem>>, vector<1x1x1x8x18xf32>
    %39 = vector.shape_cast %38 : vector<1x1x1x8x18xf32> to vector<1x8x18xf32>
    %40 = vector.shape_cast %39 : vector<1x8x18xf32> to vector<8x18xf32>
    %41 = vector.extract_strided_slice %40 {offsets = [0, 0], sizes = [8, 16], strides = [1, 1]} : vector<8x18xf32> to vector<8x16xf32>
    %42 = vector.extract_strided_slice %40 {offsets = [0, 1], sizes = [8, 16], strides = [1, 1]} : vector<8x18xf32> to vector<8x16xf32>
    %43 = vector.extract_strided_slice %40 {offsets = [0, 2], sizes = [8, 16], strides = [1, 1]} : vector<8x18xf32> to vector<8x16xf32>
    %44 = tpu.concatenate %19, %20, %21, %27, %28, %29, %41, %42, %43 in 0 : vector<8x16xf32>, vector<8x16xf32>, vector<8x16xf32>, vector<8x16xf32>, vector<8x16xf32>, vector<8x16xf32>, vector<8x16xf32>, vector<8x16xf32>, vector<8x16xf32> -> vector<72x16xf32>
    %cst_24 = arith.constant dense<0.000000e+00> : vector<8x16xf32>
    %45 = tpu.matmul %2, %44, %cst_24 {dimension_numbers = #tpu.dot_dimension_numbers<[1], [0], [0], [1], [0, 0, 1, 1], [], []>} : vector<8x72xf32>, vector<72x16xf32>, vector<8x16xf32> -> vector<8x16xf32>
    %46 = arith.addf %5, %45 : vector<8x16xf32>
    %c0_25 = arith.constant 0 : index
    %c1 = arith.constant 1 : index
    %c0_26 = arith.constant 0 : index
    %c0_27 = arith.constant 0 : index
    %47 = vector.load %arg5[%c0_25, %c1, %c0_26, %c0_27] : memref<1x16x8x16xf32, #tpu.memory_space<vmem>>, vector<1x1x8x16xf32>
    %48 = vector.shape_cast %47 : vector<1x1x8x16xf32> to vector<8x16xf32>
    %49 = vector.shape_cast %46 : vector<8x16xf32> to vector<1x1x8x16xf32>
    tpu.vector_store %arg5[%c0_25, %c1, %c0_26, %c0_27], %49 {strides = array<i32>} : memref<1x16x8x16xf32, #tpu.memory_space<vmem>>, vector<1x1x8x16xf32>,
    %c4_i32 = arith.constant 4 : i32
    %50 = arith.addi %0, %c4_i32 : i32
    %c0_28 = arith.constant 0 : index
    %c0_29 = arith.constant 0 : index
    %51 = arith.index_cast %50 : i32 to index
    %c0_30 = arith.constant 0 : index
    %c0_31 = arith.constant 0 : index
    %52 = vector.load %arg4[%c0_28, %c0_29, %51, %c0_30, %c0_31] : memref<1x1x18x8x18xf32, #tpu.memory_space<vmem>>, vector<1x1x1x8x18xf32>
    %53 = vector.shape_cast %52 : vector<1x1x1x8x18xf32> to vector<1x8x18xf32>
    %54 = vector.shape_cast %53 : vector<1x8x18xf32> to vector<8x18xf32>
    %55 = vector.extract_strided_slice %54 {offsets = [0, 0], sizes = [8, 16], strides = [1, 1]} : vector<8x18xf32> to vector<8x16xf32>
    %56 = vector.extract_strided_slice %54 {offsets = [0, 1], sizes = [8, 16], strides = [1, 1]} : vector<8x18xf32> to vector<8x16xf32>
    %57 = vector.extract_strided_slice %54 {offsets = [0, 2], sizes = [8, 16], strides = [1, 1]} : vector<8x18xf32> to vector<8x16xf32>
    %58 = tpu.concatenate %27, %28, %29, %41, %42, %43, %55, %56, %57 in 0 : vector<8x16xf32>, vector<8x16xf32>, vector<8x16xf32>, vector<8x16xf32>, vector<8x16xf32>, vector<8x16xf32>, vector<8x16xf32>, vector<8x16xf32>, vector<8x16xf32> -> vector<72x16xf32>
    %cst_32 = arith.constant dense<0.000000e+00> : vector<8x16xf32>
    %59 = tpu.matmul %2, %58, %cst_32 {dimension_numbers = #tpu.dot_dimension_numbers<[1], [0], [0], [1], [0, 0, 1, 1], [], []>} : vector<8x72xf32>, vector<72x16xf32>, vector<8x16xf32> -> vector<8x16xf32>
    %60 = arith.addf %5, %59 : vector<8x16xf32>
    %c0_33 = arith.constant 0 : index
    %c2 = arith.constant 2 : index
    %c0_34 = arith.constant 0 : index
    %c0_35 = arith.constant 0 : index
    %61 = vector.load %arg5[%c0_33, %c2, %c0_34, %c0_35] : memref<1x16x8x16xf32, #tpu.memory_space<vmem>>, vector<1x1x8x16xf32>
    %62 = vector.shape_cast %61 : vector<1x1x8x16xf32> to vector<8x16xf32>
    %63 = vector.shape_cast %60 : vector<8x16xf32> to vector<1x1x8x16xf32>
    tpu.vector_store %arg5[%c0_33, %c2, %c0_34, %c0_35], %63 {strides = array<i32>} : memref<1x16x8x16xf32, #tpu.memory_space<vmem>>, vector<1x1x8x16xf32>,
    %c5_i32 = arith.constant 5 : i32
    %64 = arith.addi %0, %c5_i32 : i32
    %c0_36 = arith.constant 0 : index
    %c0_37 = arith.constant 0 : index
    %65 = arith.index_cast %64 : i32 to index
    %c0_38 = arith.constant 0 : index
    %c0_39 = arith.constant 0 : index
    %66 = vector.load %arg4[%c0_36, %c0_37, %65, %c0_38, %c0_39] : memref<1x1x18x8x18xf32, #tpu.memory_space<vmem>>, vector<1x1x1x8x18xf32>
    %67 = vector.shape_cast %66 : vector<1x1x1x8x18xf32> to vector<1x8x18xf32>
    %68 = vector.shape_cast %67 : vector<1x8x18xf32> to vector<8x18xf32>
    %69 = vector.extract_strided_slice %68 {offsets = [0, 0], sizes = [8, 16], strides = [1, 1]} : vector<8x18xf32> to vector<8x16xf32>
    %70 = vector.extract_strided_slice %68 {offsets = [0, 1], sizes = [8, 16], strides = [1, 1]} : vector<8x18xf32> to vector<8x16xf32>
    %71 = vector.extract_strided_slice %68 {offsets = [0, 2], sizes = [8, 16], strides = [1, 1]} : vector<8x18xf32> to vector<8x16xf32>
    %72 = tpu.concatenate %41, %42, %43, %55, %56, %57, %69, %70, %71 in 0 : vector<8x16xf32>, vector<8x16xf32>, vector<8x16xf32>, vector<8x16xf32>, vector<8x16xf32>, vector<8x16xf32>, vector<8x16xf32>, vector<8x16xf32>, vector<8x16xf32> -> vector<72x16xf32>
    %cst_40 = arith.constant dense<0.000000e+00> : vector<8x16xf32>
    %73 = tpu.matmul %2, %72, %cst_40 {dimension_numbers = #tpu.dot_dimension_numbers<[1], [0], [0], [1], [0, 0, 1, 1], [], []>} : vector<8x72xf32>, vector<72x16xf32>, vector<8x16xf32> -> vector<8x16xf32>
    %74 = arith.addf %5, %73 : vector<8x16xf32>
    %c0_41 = arith.constant 0 : index
    %c3 = arith.constant 3 : index
    %c0_42 = arith.constant 0 : index
    %c0_43 = arith.constant 0 : index
    %75 = vector.load %arg5[%c0_41, %c3, %c0_42, %c0_43] : memref<1x16x8x16xf32, #tpu.memory_space<vmem>>, vector<1x1x8x16xf32>
    %76 = vector.shape_cast %75 : vector<1x1x8x16xf32> to vector<8x16xf32>
    %77 = vector.shape_cast %74 : vector<8x16xf32> to vector<1x1x8x16xf32>
    tpu.vector_store %arg5[%c0_41, %c3, %c0_42, %c0_43], %77 {strides = array<i32>} : memref<1x16x8x16xf32, #tpu.memory_space<vmem>>, vector<1x1x8x16xf32>,
    %c6_i32 = arith.constant 6 : i32
    %78 = arith.addi %0, %c6_i32 : i32
    %c0_44 = arith.constant 0 : index
    %c0_45 = arith.constant 0 : index
    %79 = arith.index_cast %78 : i32 to index
    %c0_46 = arith.constant 0 : index
    %c0_47 = arith.constant 0 : index
    %80 = vector.load %arg4[%c0_44, %c0_45, %79, %c0_46, %c0_47] : memref<1x1x18x8x18xf32, #tpu.memory_space<vmem>>, vector<1x1x1x8x18xf32>
    %81 = vector.shape_cast %80 : vector<1x1x1x8x18xf32> to vector<1x8x18xf32>
    %82 = vector.shape_cast %81 : vector<1x8x18xf32> to vector<8x18xf32>
    %83 = vector.extract_strided_slice %82 {offsets = [0, 0], sizes = [8, 16], strides = [1, 1]} : vector<8x18xf32> to vector<8x16xf32>
    %84 = vector.extract_strided_slice %82 {offsets = [0, 1], sizes = [8, 16], strides = [1, 1]} : vector<8x18xf32> to vector<8x16xf32>
    %85 = vector.extract_strided_slice %82 {offsets = [0, 2], sizes = [8, 16], strides = [1, 1]} : vector<8x18xf32> to vector<8x16xf32>
    %86 = tpu.concatenate %55, %56, %57, %69, %70, %71, %83, %84, %85 in 0 : vector<8x16xf32>, vector<8x16xf32>, vector<8x16xf32>, vector<8x16xf32>, vector<8x16xf32>, vector<8x16xf32>, vector<8x16xf32>, vector<8x16xf32>, vector<8x16xf32> -> vector<72x16xf32>
    %cst_48 = arith.constant dense<0.000000e+00> : vector<8x16xf32>
    %87 = tpu.matmul %2, %86, %cst_48 {dimension_numbers = #tpu.dot_dimension_numbers<[1], [0], [0], [1], [0, 0, 1, 1], [], []>} : vector<8x72xf32>, vector<72x16xf32>, vector<8x16xf32> -> vector<8x16xf32>
    %88 = arith.addf %5, %87 : vector<8x16xf32>
    %c0_49 = arith.constant 0 : index
    %c4 = arith.constant 4 : index
    %c0_50 = arith.constant 0 : index
    %c0_51 = arith.constant 0 : index
    %89 = vector.load %arg5[%c0_49, %c4, %c0_50, %c0_51] : memref<1x16x8x16xf32, #tpu.memory_space<vmem>>, vector<1x1x8x16xf32>
    %90 = vector.shape_cast %89 : vector<1x1x8x16xf32> to vector<8x16xf32>
    %91 = vector.shape_cast %88 : vector<8x16xf32> to vector<1x1x8x16xf32>
    tpu.vector_store %arg5[%c0_49, %c4, %c0_50, %c0_51], %91 {strides = array<i32>} : memref<1x16x8x16xf32, #tpu.memory_space<vmem>>, vector<1x1x8x16xf32>,
    %c7_i32 = arith.constant 7 : i32
    %92 = arith.addi %0, %c7_i32 : i32
    %c0_52 = arith.constant 0 : index
    %c0_53 = arith.constant 0 : index
    %93 = arith.index_cast %92 : i32 to index
    %c0_54 = arith.constant 0 : index
    %c0_55 = arith.constant 0 : index
    %94 = vector.load %arg4[%c0_52, %c0_53, %93, %c0_54, %c0_55] : memref<1x1x18x8x18xf32, #tpu.memory_space<vmem>>, vector<1x1x1x8x18xf32>
    %95 = vector.shape_cast %94 : vector<1x1x1x8x18xf32> to vector<1x8x18xf32>
    %96 = vector.shape_cast %95 : vector<1x8x18xf32> to vector<8x18xf32>
    %97 = vector.extract_strided_slice %96 {offsets = [0, 0], sizes = [8, 16], strides = [1, 1]} : vector<8x18xf32> to vector<8x16xf32>
    %98 = vector.extract_strided_slice %96 {offsets = [0, 1], sizes = [8, 16], strides = [1, 1]} : vector<8x18xf32> to vector<8x16xf32>
    %99 = vector.extract_strided_slice %96 {offsets = [0, 2], sizes = [8, 16], strides = [1, 1]} : vector<8x18xf32> to vector<8x16xf32>
    %100 = tpu.concatenate %69, %70, %71, %83, %84, %85, %97, %98, %99 in 0 : vector<8x16xf32>, vector<8x16xf32>, vector<8x16xf32>, vector<8x16xf32>, vector<8x16xf32>, vector<8x16xf32>, vector<8x16xf32>, vector<8x16xf32>, vector<8x16xf32> -> vector<72x16xf32>
    %cst_56 = arith.constant dense<0.000000e+00> : vector<8x16xf32>
    %101 = tpu.matmul %2, %100, %cst_56 {dimension_numbers = #tpu.dot_dimension_numbers<[1], [0], [0], [1], [0, 0, 1, 1], [], []>} : vector<8x72xf32>, vector<72x16xf32>, vector<8x16xf32> -> vector<8x16xf32>
    %102 = arith.addf %5, %101 : vector<8x16xf32>
    %c0_57 = arith.constant 0 : index
    %c5 = arith.constant 5 : index
    %c0_58 = arith.constant 0 : index
    %c0_59 = arith.constant 0 : index
    %103 = vector.load %arg5[%c0_57, %c5, %c0_58, %c0_59] : memref<1x16x8x16xf32, #tpu.memory_space<vmem>>, vector<1x1x8x16xf32>
    %104 = vector.shape_cast %103 : vector<1x1x8x16xf32> to vector<8x16xf32>
    %105 = vector.shape_cast %102 : vector<8x16xf32> to vector<1x1x8x16xf32>
    tpu.vector_store %arg5[%c0_57, %c5, %c0_58, %c0_59], %105 {strides = array<i32>} : memref<1x16x8x16xf32, #tpu.memory_space<vmem>>, vector<1x1x8x16xf32>,
    %c8_i32 = arith.constant 8 : i32
    %106 = arith.addi %0, %c8_i32 : i32
    %c0_60 = arith.constant 0 : index
    %c0_61 = arith.constant 0 : index
    %107 = arith.index_cast %106 : i32 to index
    %c0_62 = arith.constant 0 : index
    %c0_63 = arith.constant 0 : index
    %108 = vector.load %arg4[%c0_60, %c0_61, %107, %c0_62, %c0_63] : memref<1x1x18x8x18xf32, #tpu.memory_space<vmem>>, vector<1x1x1x8x18xf32>
    %109 = vector.shape_cast %108 : vector<1x1x1x8x18xf32> to vector<1x8x18xf32>
    %110 = vector.shape_cast %109 : vector<1x8x18xf32> to vector<8x18xf32>
    %111 = vector.extract_strided_slice %110 {offsets = [0, 0], sizes = [8, 16], strides = [1, 1]} : vector<8x18xf32> to vector<8x16xf32>
    %112 = vector.extract_strided_slice %110 {offsets = [0, 1], sizes = [8, 16], strides = [1, 1]} : vector<8x18xf32> to vector<8x16xf32>
    %113 = vector.extract_strided_slice %110 {offsets = [0, 2], sizes = [8, 16], strides = [1, 1]} : vector<8x18xf32> to vector<8x16xf32>
    %114 = tpu.concatenate %83, %84, %85, %97, %98, %99, %111, %112, %113 in 0 : vector<8x16xf32>, vector<8x16xf32>, vector<8x16xf32>, vector<8x16xf32>, vector<8x16xf32>, vector<8x16xf32>, vector<8x16xf32>, vector<8x16xf32>, vector<8x16xf32> -> vector<72x16xf32>
    %cst_64 = arith.constant dense<0.000000e+00> : vector<8x16xf32>
    %115 = tpu.matmul %2, %114, %cst_64 {dimension_numbers = #tpu.dot_dimension_numbers<[1], [0], [0], [1], [0, 0, 1, 1], [], []>} : vector<8x72xf32>, vector<72x16xf32>, vector<8x16xf32> -> vector<8x16xf32>
    %116 = arith.addf %5, %115 : vector<8x16xf32>
    %c0_65 = arith.constant 0 : index
    %c6 = arith.constant 6 : index
    %c0_66 = arith.constant 0 : index
    %c0_67 = arith.constant 0 : index
    %117 = vector.load %arg5[%c0_65, %c6, %c0_66, %c0_67] : memref<1x16x8x16xf32, #tpu.memory_space<vmem>>, vector<1x1x8x16xf32>
    %118 = vector.shape_cast %117 : vector<1x1x8x16xf32> to vector<8x16xf32>
    %119 = vector.shape_cast %116 : vector<8x16xf32> to vector<1x1x8x16xf32>
    tpu.vector_store %arg5[%c0_65, %c6, %c0_66, %c0_67], %119 {strides = array<i32>} : memref<1x16x8x16xf32, #tpu.memory_space<vmem>>, vector<1x1x8x16xf32>,
    %c9_i32 = arith.constant 9 : i32
    %120 = arith.addi %0, %c9_i32 : i32
    %c0_68 = arith.constant 0 : index
    %c0_69 = arith.constant 0 : index
    %121 = arith.index_cast %120 : i32 to index
    %c0_70 = arith.constant 0 : index
    %c0_71 = arith.constant 0 : index
    %122 = vector.load %arg4[%c0_68, %c0_69, %121, %c0_70, %c0_71] : memref<1x1x18x8x18xf32, #tpu.memory_space<vmem>>, vector<1x1x1x8x18xf32>
    %123 = vector.shape_cast %122 : vector<1x1x1x8x18xf32> to vector<1x8x18xf32>
    %124 = vector.shape_cast %123 : vector<1x8x18xf32> to vector<8x18xf32>
    %125 = vector.extract_strided_slice %124 {offsets = [0, 0], sizes = [8, 16], strides = [1, 1]} : vector<8x18xf32> to vector<8x16xf32>
    %126 = vector.extract_strided_slice %124 {offsets = [0, 1], sizes = [8, 16], strides = [1, 1]} : vector<8x18xf32> to vector<8x16xf32>
    %127 = vector.extract_strided_slice %124 {offsets = [0, 2], sizes = [8, 16], strides = [1, 1]} : vector<8x18xf32> to vector<8x16xf32>
    %128 = tpu.concatenate %97, %98, %99, %111, %112, %113, %125, %126, %127 in 0 : vector<8x16xf32>, vector<8x16xf32>, vector<8x16xf32>, vector<8x16xf32>, vector<8x16xf32>, vector<8x16xf32>, vector<8x16xf32>, vector<8x16xf32>, vector<8x16xf32> -> vector<72x16xf32>
    %cst_72 = arith.constant dense<0.000000e+00> : vector<8x16xf32>
    %129 = tpu.matmul %2, %128, %cst_72 {dimension_numbers = #tpu.dot_dimension_numbers<[1], [0], [0], [1], [0, 0, 1, 1], [], []>} : vector<8x72xf32>, vector<72x16xf32>, vector<8x16xf32> -> vector<8x16xf32>
    %130 = arith.addf %5, %129 : vector<8x16xf32>
    %c0_73 = arith.constant 0 : index
    %c7 = arith.constant 7 : index
    %c0_74 = arith.constant 0 : index
    %c0_75 = arith.constant 0 : index
    %131 = vector.load %arg5[%c0_73, %c7, %c0_74, %c0_75] : memref<1x16x8x16xf32, #tpu.memory_space<vmem>>, vector<1x1x8x16xf32>
    %132 = vector.shape_cast %131 : vector<1x1x8x16xf32> to vector<8x16xf32>
    %133 = vector.shape_cast %130 : vector<8x16xf32> to vector<1x1x8x16xf32>
    tpu.vector_store %arg5[%c0_73, %c7, %c0_74, %c0_75], %133 {strides = array<i32>} : memref<1x16x8x16xf32, #tpu.memory_space<vmem>>, vector<1x1x8x16xf32>,
    %c10_i32 = arith.constant 10 : i32
    %134 = arith.addi %0, %c10_i32 : i32
    %c0_76 = arith.constant 0 : index
    %c0_77 = arith.constant 0 : index
    %135 = arith.index_cast %134 : i32 to index
    %c0_78 = arith.constant 0 : index
    %c0_79 = arith.constant 0 : index
    %136 = vector.load %arg4[%c0_76, %c0_77, %135, %c0_78, %c0_79] : memref<1x1x18x8x18xf32, #tpu.memory_space<vmem>>, vector<1x1x1x8x18xf32>
    %137 = vector.shape_cast %136 : vector<1x1x1x8x18xf32> to vector<1x8x18xf32>
    %138 = vector.shape_cast %137 : vector<1x8x18xf32> to vector<8x18xf32>
    %139 = vector.extract_strided_slice %138 {offsets = [0, 0], sizes = [8, 16], strides = [1, 1]} : vector<8x18xf32> to vector<8x16xf32>
    %140 = vector.extract_strided_slice %138 {offsets = [0, 1], sizes = [8, 16], strides = [1, 1]} : vector<8x18xf32> to vector<8x16xf32>
    %141 = vector.extract_strided_slice %138 {offsets = [0, 2], sizes = [8, 16], strides = [1, 1]} : vector<8x18xf32> to vector<8x16xf32>
    %142 = tpu.concatenate %111, %112, %113, %125, %126, %127, %139, %140, %141 in 0 : vector<8x16xf32>, vector<8x16xf32>, vector<8x16xf32>, vector<8x16xf32>, vector<8x16xf32>, vector<8x16xf32>, vector<8x16xf32>, vector<8x16xf32>, vector<8x16xf32> -> vector<72x16xf32>
    %cst_80 = arith.constant dense<0.000000e+00> : vector<8x16xf32>
    %143 = tpu.matmul %2, %142, %cst_80 {dimension_numbers = #tpu.dot_dimension_numbers<[1], [0], [0], [1], [0, 0, 1, 1], [], []>} : vector<8x72xf32>, vector<72x16xf32>, vector<8x16xf32> -> vector<8x16xf32>
    %144 = arith.addf %5, %143 : vector<8x16xf32>
    %c0_81 = arith.constant 0 : index
    %c8 = arith.constant 8 : index
    %c0_82 = arith.constant 0 : index
    %c0_83 = arith.constant 0 : index
    %145 = vector.load %arg5[%c0_81, %c8, %c0_82, %c0_83] : memref<1x16x8x16xf32, #tpu.memory_space<vmem>>, vector<1x1x8x16xf32>
    %146 = vector.shape_cast %145 : vector<1x1x8x16xf32> to vector<8x16xf32>
    %147 = vector.shape_cast %144 : vector<8x16xf32> to vector<1x1x8x16xf32>
    tpu.vector_store %arg5[%c0_81, %c8, %c0_82, %c0_83], %147 {strides = array<i32>} : memref<1x16x8x16xf32, #tpu.memory_space<vmem>>, vector<1x1x8x16xf32>,
    %c11_i32 = arith.constant 11 : i32
    %148 = arith.addi %0, %c11_i32 : i32
    %c0_84 = arith.constant 0 : index
    %c0_85 = arith.constant 0 : index
    %149 = arith.index_cast %148 : i32 to index
    %c0_86 = arith.constant 0 : index
    %c0_87 = arith.constant 0 : index
    %150 = vector.load %arg4[%c0_84, %c0_85, %149, %c0_86, %c0_87] : memref<1x1x18x8x18xf32, #tpu.memory_space<vmem>>, vector<1x1x1x8x18xf32>
    %151 = vector.shape_cast %150 : vector<1x1x1x8x18xf32> to vector<1x8x18xf32>
    %152 = vector.shape_cast %151 : vector<1x8x18xf32> to vector<8x18xf32>
    %153 = vector.extract_strided_slice %152 {offsets = [0, 0], sizes = [8, 16], strides = [1, 1]} : vector<8x18xf32> to vector<8x16xf32>
    %154 = vector.extract_strided_slice %152 {offsets = [0, 1], sizes = [8, 16], strides = [1, 1]} : vector<8x18xf32> to vector<8x16xf32>
    %155 = vector.extract_strided_slice %152 {offsets = [0, 2], sizes = [8, 16], strides = [1, 1]} : vector<8x18xf32> to vector<8x16xf32>
    %156 = tpu.concatenate %125, %126, %127, %139, %140, %141, %153, %154, %155 in 0 : vector<8x16xf32>, vector<8x16xf32>, vector<8x16xf32>, vector<8x16xf32>, vector<8x16xf32>, vector<8x16xf32>, vector<8x16xf32>, vector<8x16xf32>, vector<8x16xf32> -> vector<72x16xf32>
    %cst_88 = arith.constant dense<0.000000e+00> : vector<8x16xf32>
    %157 = tpu.matmul %2, %156, %cst_88 {dimension_numbers = #tpu.dot_dimension_numbers<[1], [0], [0], [1], [0, 0, 1, 1], [], []>} : vector<8x72xf32>, vector<72x16xf32>, vector<8x16xf32> -> vector<8x16xf32>
    %158 = arith.addf %5, %157 : vector<8x16xf32>
    %c0_89 = arith.constant 0 : index
    %c9 = arith.constant 9 : index
    %c0_90 = arith.constant 0 : index
    %c0_91 = arith.constant 0 : index
    %159 = vector.load %arg5[%c0_89, %c9, %c0_90, %c0_91] : memref<1x16x8x16xf32, #tpu.memory_space<vmem>>, vector<1x1x8x16xf32>
    %160 = vector.shape_cast %159 : vector<1x1x8x16xf32> to vector<8x16xf32>
    %161 = vector.shape_cast %158 : vector<8x16xf32> to vector<1x1x8x16xf32>
    tpu.vector_store %arg5[%c0_89, %c9, %c0_90, %c0_91], %161 {strides = array<i32>} : memref<1x16x8x16xf32, #tpu.memory_space<vmem>>, vector<1x1x8x16xf32>,
    %c12_i32 = arith.constant 12 : i32
    %162 = arith.addi %0, %c12_i32 : i32
    %c0_92 = arith.constant 0 : index
    %c0_93 = arith.constant 0 : index
    %163 = arith.index_cast %162 : i32 to index
    %c0_94 = arith.constant 0 : index
    %c0_95 = arith.constant 0 : index
    %164 = vector.load %arg4[%c0_92, %c0_93, %163, %c0_94, %c0_95] : memref<1x1x18x8x18xf32, #tpu.memory_space<vmem>>, vector<1x1x1x8x18xf32>
    %165 = vector.shape_cast %164 : vector<1x1x1x8x18xf32> to vector<1x8x18xf32>
    %166 = vector.shape_cast %165 : vector<1x8x18xf32> to vector<8x18xf32>
    %167 = vector.extract_strided_slice %166 {offsets = [0, 0], sizes = [8, 16], strides = [1, 1]} : vector<8x18xf32> to vector<8x16xf32>
    %168 = vector.extract_strided_slice %166 {offsets = [0, 1], sizes = [8, 16], strides = [1, 1]} : vector<8x18xf32> to vector<8x16xf32>
    %169 = vector.extract_strided_slice %166 {offsets = [0, 2], sizes = [8, 16], strides = [1, 1]} : vector<8x18xf32> to vector<8x16xf32>
    %170 = tpu.concatenate %139, %140, %141, %153, %154, %155, %167, %168, %169 in 0 : vector<8x16xf32>, vector<8x16xf32>, vector<8x16xf32>, vector<8x16xf32>, vector<8x16xf32>, vector<8x16xf32>, vector<8x16xf32>, vector<8x16xf32>, vector<8x16xf32> -> vector<72x16xf32>
    %cst_96 = arith.constant dense<0.000000e+00> : vector<8x16xf32>
    %171 = tpu.matmul %2, %170, %cst_96 {dimension_numbers = #tpu.dot_dimension_numbers<[1], [0], [0], [1], [0, 0, 1, 1], [], []>} : vector<8x72xf32>, vector<72x16xf32>, vector<8x16xf32> -> vector<8x16xf32>
    %172 = arith.addf %5, %171 : vector<8x16xf32>
    %c0_97 = arith.constant 0 : index
    %c10 = arith.constant 10 : index
    %c0_98 = arith.constant 0 : index
    %c0_99 = arith.constant 0 : index
    %173 = vector.load %arg5[%c0_97, %c10, %c0_98, %c0_99] : memref<1x16x8x16xf32, #tpu.memory_space<vmem>>, vector<1x1x8x16xf32>
    %174 = vector.shape_cast %173 : vector<1x1x8x16xf32> to vector<8x16xf32>
    %175 = vector.shape_cast %172 : vector<8x16xf32> to vector<1x1x8x16xf32>
    tpu.vector_store %arg5[%c0_97, %c10, %c0_98, %c0_99], %175 {strides = array<i32>} : memref<1x16x8x16xf32, #tpu.memory_space<vmem>>, vector<1x1x8x16xf32>,
    %c13_i32 = arith.constant 13 : i32
    %176 = arith.addi %0, %c13_i32 : i32
    %c0_100 = arith.constant 0 : index
    %c0_101 = arith.constant 0 : index
    %177 = arith.index_cast %176 : i32 to index
    %c0_102 = arith.constant 0 : index
    %c0_103 = arith.constant 0 : index
    %178 = vector.load %arg4[%c0_100, %c0_101, %177, %c0_102, %c0_103] : memref<1x1x18x8x18xf32, #tpu.memory_space<vmem>>, vector<1x1x1x8x18xf32>
    %179 = vector.shape_cast %178 : vector<1x1x1x8x18xf32> to vector<1x8x18xf32>
    %180 = vector.shape_cast %179 : vector<1x8x18xf32> to vector<8x18xf32>
    %181 = vector.extract_strided_slice %180 {offsets = [0, 0], sizes = [8, 16], strides = [1, 1]} : vector<8x18xf32> to vector<8x16xf32>
    %182 = vector.extract_strided_slice %180 {offsets = [0, 1], sizes = [8, 16], strides = [1, 1]} : vector<8x18xf32> to vector<8x16xf32>
    %183 = vector.extract_strided_slice %180 {offsets = [0, 2], sizes = [8, 16], strides = [1, 1]} : vector<8x18xf32> to vector<8x16xf32>
    %184 = tpu.concatenate %153, %154, %155, %167, %168, %169, %181, %182, %183 in 0 : vector<8x16xf32>, vector<8x16xf32>, vector<8x16xf32>, vector<8x16xf32>, vector<8x16xf32>, vector<8x16xf32>, vector<8x16xf32>, vector<8x16xf32>, vector<8x16xf32> -> vector<72x16xf32>
    %cst_104 = arith.constant dense<0.000000e+00> : vector<8x16xf32>
    %185 = tpu.matmul %2, %184, %cst_104 {dimension_numbers = #tpu.dot_dimension_numbers<[1], [0], [0], [1], [0, 0, 1, 1], [], []>} : vector<8x72xf32>, vector<72x16xf32>, vector<8x16xf32> -> vector<8x16xf32>
    %186 = arith.addf %5, %185 : vector<8x16xf32>
    %c0_105 = arith.constant 0 : index
    %c11 = arith.constant 11 : index
    %c0_106 = arith.constant 0 : index
    %c0_107 = arith.constant 0 : index
    %187 = vector.load %arg5[%c0_105, %c11, %c0_106, %c0_107] : memref<1x16x8x16xf32, #tpu.memory_space<vmem>>, vector<1x1x8x16xf32>
    %188 = vector.shape_cast %187 : vector<1x1x8x16xf32> to vector<8x16xf32>
    %189 = vector.shape_cast %186 : vector<8x16xf32> to vector<1x1x8x16xf32>
    tpu.vector_store %arg5[%c0_105, %c11, %c0_106, %c0_107], %189 {strides = array<i32>} : memref<1x16x8x16xf32, #tpu.memory_space<vmem>>, vector<1x1x8x16xf32>,
    %c14_i32 = arith.constant 14 : i32
    %190 = arith.addi %0, %c14_i32 : i32
    %c0_108 = arith.constant 0 : index
    %c0_109 = arith.constant 0 : index
    %191 = arith.index_cast %190 : i32 to index
    %c0_110 = arith.constant 0 : index
    %c0_111 = arith.constant 0 : index
    %192 = vector.load %arg4[%c0_108, %c0_109, %191, %c0_110, %c0_111] : memref<1x1x18x8x18xf32, #tpu.memory_space<vmem>>, vector<1x1x1x8x18xf32>
    %193 = vector.shape_cast %192 : vector<1x1x1x8x18xf32> to vector<1x8x18xf32>
    %194 = vector.shape_cast %193 : vector<1x8x18xf32> to vector<8x18xf32>
    %195 = vector.extract_strided_slice %194 {offsets = [0, 0], sizes = [8, 16], strides = [1, 1]} : vector<8x18xf32> to vector<8x16xf32>
    %196 = vector.extract_strided_slice %194 {offsets = [0, 1], sizes = [8, 16], strides = [1, 1]} : vector<8x18xf32> to vector<8x16xf32>
    %197 = vector.extract_strided_slice %194 {offsets = [0, 2], sizes = [8, 16], strides = [1, 1]} : vector<8x18xf32> to vector<8x16xf32>
    %198 = tpu.concatenate %167, %168, %169, %181, %182, %183, %195, %196, %197 in 0 : vector<8x16xf32>, vector<8x16xf32>, vector<8x16xf32>, vector<8x16xf32>, vector<8x16xf32>, vector<8x16xf32>, vector<8x16xf32>, vector<8x16xf32>, vector<8x16xf32> -> vector<72x16xf32>
    %cst_112 = arith.constant dense<0.000000e+00> : vector<8x16xf32>
    %199 = tpu.matmul %2, %198, %cst_112 {dimension_numbers = #tpu.dot_dimension_numbers<[1], [0], [0], [1], [0, 0, 1, 1], [], []>} : vector<8x72xf32>, vector<72x16xf32>, vector<8x16xf32> -> vector<8x16xf32>
    %200 = arith.addf %5, %199 : vector<8x16xf32>
    %c0_113 = arith.constant 0 : index
    %c12 = arith.constant 12 : index
    %c0_114 = arith.constant 0 : index
    %c0_115 = arith.constant 0 : index
    %201 = vector.load %arg5[%c0_113, %c12, %c0_114, %c0_115] : memref<1x16x8x16xf32, #tpu.memory_space<vmem>>, vector<1x1x8x16xf32>
    %202 = vector.shape_cast %201 : vector<1x1x8x16xf32> to vector<8x16xf32>
    %203 = vector.shape_cast %200 : vector<8x16xf32> to vector<1x1x8x16xf32>
    tpu.vector_store %arg5[%c0_113, %c12, %c0_114, %c0_115], %203 {strides = array<i32>} : memref<1x16x8x16xf32, #tpu.memory_space<vmem>>, vector<1x1x8x16xf32>,
    %c15_i32 = arith.constant 15 : i32
    %204 = arith.addi %0, %c15_i32 : i32
    %c0_116 = arith.constant 0 : index
    %c0_117 = arith.constant 0 : index
    %205 = arith.index_cast %204 : i32 to index
    %c0_118 = arith.constant 0 : index
    %c0_119 = arith.constant 0 : index
    %206 = vector.load %arg4[%c0_116, %c0_117, %205, %c0_118, %c0_119] : memref<1x1x18x8x18xf32, #tpu.memory_space<vmem>>, vector<1x1x1x8x18xf32>
    %207 = vector.shape_cast %206 : vector<1x1x1x8x18xf32> to vector<1x8x18xf32>
    %208 = vector.shape_cast %207 : vector<1x8x18xf32> to vector<8x18xf32>
    %209 = vector.extract_strided_slice %208 {offsets = [0, 0], sizes = [8, 16], strides = [1, 1]} : vector<8x18xf32> to vector<8x16xf32>
    %210 = vector.extract_strided_slice %208 {offsets = [0, 1], sizes = [8, 16], strides = [1, 1]} : vector<8x18xf32> to vector<8x16xf32>
    %211 = vector.extract_strided_slice %208 {offsets = [0, 2], sizes = [8, 16], strides = [1, 1]} : vector<8x18xf32> to vector<8x16xf32>
    %212 = tpu.concatenate %181, %182, %183, %195, %196, %197, %209, %210, %211 in 0 : vector<8x16xf32>, vector<8x16xf32>, vector<8x16xf32>, vector<8x16xf32>, vector<8x16xf32>, vector<8x16xf32>, vector<8x16xf32>, vector<8x16xf32>, vector<8x16xf32> -> vector<72x16xf32>
    %cst_120 = arith.constant dense<0.000000e+00> : vector<8x16xf32>
    %213 = tpu.matmul %2, %212, %cst_120 {dimension_numbers = #tpu.dot_dimension_numbers<[1], [0], [0], [1], [0, 0, 1, 1], [], []>} : vector<8x72xf32>, vector<72x16xf32>, vector<8x16xf32> -> vector<8x16xf32>
    %214 = arith.addf %5, %213 : vector<8x16xf32>
    %c0_121 = arith.constant 0 : index
    %c13 = arith.constant 13 : index
    %c0_122 = arith.constant 0 : index
    %c0_123 = arith.constant 0 : index
    %215 = vector.load %arg5[%c0_121, %c13, %c0_122, %c0_123] : memref<1x16x8x16xf32, #tpu.memory_space<vmem>>, vector<1x1x8x16xf32>
    %216 = vector.shape_cast %215 : vector<1x1x8x16xf32> to vector<8x16xf32>
    %217 = vector.shape_cast %214 : vector<8x16xf32> to vector<1x1x8x16xf32>
    tpu.vector_store %arg5[%c0_121, %c13, %c0_122, %c0_123], %217 {strides = array<i32>} : memref<1x16x8x16xf32, #tpu.memory_space<vmem>>, vector<1x1x8x16xf32>,
    %c16_i32_124 = arith.constant 16 : i32
    %218 = arith.addi %0, %c16_i32_124 : i32
    %c0_125 = arith.constant 0 : index
    %c0_126 = arith.constant 0 : index
    %219 = arith.index_cast %218 : i32 to index
    %c0_127 = arith.constant 0 : index
    %c0_128 = arith.constant 0 : index
    %220 = vector.load %arg4[%c0_125, %c0_126, %219, %c0_127, %c0_128] : memref<1x1x18x8x18xf32, #tpu.memory_space<vmem>>, vector<1x1x1x8x18xf32>
    %221 = vector.shape_cast %220 : vector<1x1x1x8x18xf32> to vector<1x8x18xf32>
    %222 = vector.shape_cast %221 : vector<1x8x18xf32> to vector<8x18xf32>
    %223 = vector.extract_strided_slice %222 {offsets = [0, 0], sizes = [8, 16], strides = [1, 1]} : vector<8x18xf32> to vector<8x16xf32>
    %224 = vector.extract_strided_slice %222 {offsets = [0, 1], sizes = [8, 16], strides = [1, 1]} : vector<8x18xf32> to vector<8x16xf32>
    %225 = vector.extract_strided_slice %222 {offsets = [0, 2], sizes = [8, 16], strides = [1, 1]} : vector<8x18xf32> to vector<8x16xf32>
    %226 = tpu.concatenate %195, %196, %197, %209, %210, %211, %223, %224, %225 in 0 : vector<8x16xf32>, vector<8x16xf32>, vector<8x16xf32>, vector<8x16xf32>, vector<8x16xf32>, vector<8x16xf32>, vector<8x16xf32>, vector<8x16xf32>, vector<8x16xf32> -> vector<72x16xf32>
    %cst_129 = arith.constant dense<0.000000e+00> : vector<8x16xf32>
    %227 = tpu.matmul %2, %226, %cst_129 {dimension_numbers = #tpu.dot_dimension_numbers<[1], [0], [0], [1], [0, 0, 1, 1], [], []>} : vector<8x72xf32>, vector<72x16xf32>, vector<8x16xf32> -> vector<8x16xf32>
    %228 = arith.addf %5, %227 : vector<8x16xf32>
    %c0_130 = arith.constant 0 : index
    %c14 = arith.constant 14 : index
    %c0_131 = arith.constant 0 : index
    %c0_132 = arith.constant 0 : index
    %229 = vector.load %arg5[%c0_130, %c14, %c0_131, %c0_132] : memref<1x16x8x16xf32, #tpu.memory_space<vmem>>, vector<1x1x8x16xf32>
    %230 = vector.shape_cast %229 : vector<1x1x8x16xf32> to vector<8x16xf32>
    %231 = vector.shape_cast %228 : vector<8x16xf32> to vector<1x1x8x16xf32>
    tpu.vector_store %arg5[%c0_130, %c14, %c0_131, %c0_132], %231 {strides = array<i32>} : memref<1x16x8x16xf32, #tpu.memory_space<vmem>>, vector<1x1x8x16xf32>,
    %c17_i32 = arith.constant 17 : i32
    %232 = arith.addi %0, %c17_i32 : i32
    %c0_133 = arith.constant 0 : index
    %c0_134 = arith.constant 0 : index
    %233 = arith.index_cast %232 : i32 to index
    %c0_135 = arith.constant 0 : index
    %c0_136 = arith.constant 0 : index
    %234 = vector.load %arg4[%c0_133, %c0_134, %233, %c0_135, %c0_136] : memref<1x1x18x8x18xf32, #tpu.memory_space<vmem>>, vector<1x1x1x8x18xf32>
    %235 = vector.shape_cast %234 : vector<1x1x1x8x18xf32> to vector<1x8x18xf32>
    %236 = vector.shape_cast %235 : vector<1x8x18xf32> to vector<8x18xf32>
    %237 = vector.extract_strided_slice %236 {offsets = [0, 0], sizes = [8, 16], strides = [1, 1]} : vector<8x18xf32> to vector<8x16xf32>
    %238 = vector.extract_strided_slice %236 {offsets = [0, 1], sizes = [8, 16], strides = [1, 1]} : vector<8x18xf32> to vector<8x16xf32>
    %239 = vector.extract_strided_slice %236 {offsets = [0, 2], sizes = [8, 16], strides = [1, 1]} : vector<8x18xf32> to vector<8x16xf32>
    %240 = tpu.concatenate %209, %210, %211, %223, %224, %225, %237, %238, %239 in 0 : vector<8x16xf32>, vector<8x16xf32>, vector<8x16xf32>, vector<8x16xf32>, vector<8x16xf32>, vector<8x16xf32>, vector<8x16xf32>, vector<8x16xf32>, vector<8x16xf32> -> vector<72x16xf32>
    %cst_137 = arith.constant dense<0.000000e+00> : vector<8x16xf32>
    %241 = tpu.matmul %2, %240, %cst_137 {dimension_numbers = #tpu.dot_dimension_numbers<[1], [0], [0], [1], [0, 0, 1, 1], [], []>} : vector<8x72xf32>, vector<72x16xf32>, vector<8x16xf32> -> vector<8x16xf32>
    %242 = arith.addf %5, %241 : vector<8x16xf32>
    %c0_138 = arith.constant 0 : index
    %c15 = arith.constant 15 : index
    %c0_139 = arith.constant 0 : index
    %c0_140 = arith.constant 0 : index
    %243 = vector.load %arg5[%c0_138, %c15, %c0_139, %c0_140] : memref<1x16x8x16xf32, #tpu.memory_space<vmem>>, vector<1x1x8x16xf32>
    %244 = vector.shape_cast %243 : vector<1x1x8x16xf32> to vector<8x16xf32>
    %245 = vector.shape_cast %242 : vector<8x16xf32> to vector<1x1x8x16xf32>
    tpu.vector_store %arg5[%c0_138, %c15, %c0_139, %c0_140], %245 {strides = array<i32>} : memref<1x16x8x16xf32, #tpu.memory_space<vmem>>, vector<1x1x8x16xf32>,
    return
  }
  func.func @transform_0(%arg0: i32, %arg1: i32) -> (i32, i32, i32) {
    %c0_i32 = arith.constant 0 : i32
    %c0_i32_0 = arith.constant 0 : i32
    %c0_i32_1 = arith.constant 0 : i32
    return %arg0, %c0_i32, %c0_i32_0 : i32, i32, i32
  }
  func.func @transform_1(%arg0: i32, %arg1: i32) -> (i32, i32) {
    %c0_i32 = arith.constant 0 : i32
    %c0_i32_0 = arith.constant 0 : i32
    %c0_i32_1 = arith.constant 0 : i32
    return %c0_i32, %c0_i32_0 : i32, i32
  }
  func.func @transform_2(%arg0: i32, %arg1: i32) -> (i32, i32, i32, i32, i32) {
    %c0_i32 = arith.constant 0 : i32
    %c0_i32_0 = arith.constant 0 : i32
    %c0_i32_1 = arith.constant 0 : i32
    %c0_i32_2 = arith.constant 0 : i32
    %c0_i32_3 = arith.constant 0 : i32
    return %arg0, %c0_i32, %c0_i32_0, %c0_i32_1, %c0_i32_2 : i32, i32, i32, i32, i32
  }
  func.func @transform_3(%arg0: i32, %arg1: i32) -> (i32, i32, i32, i32) {
    %c0_i32 = arith.constant 0 : i32
    %c0_i32_0 = arith.constant 0 : i32
    %c0_i32_1 = arith.constant 0 : i32
    return %arg0, %arg1, %c0_i32, %c0_i32_0 : i32, i32, i32, i32
  }
}

</mosaic_0001>

<llo_original>
// kernel: tile.11
$region0: #{tile.11}
  %s0 = inlined_call_operand.vmem [shape: f32[2,9,16], index: 0, kind: input, shape index: {}]
  %s1 = inlined_call_operand.vmem [shape: f32[18,16], index: 1, kind: output, shape index: {}]
  $region1: #{tile.11} parent=0
    #allocation0 [shape = 'u8[65536]{0}', space=vmem, size = 0x10000, scoped, tag = 'scoped mem for input reshape']
    %s3 = ssub.s32 4, 1
    %s4 = scalar_lea.vmem %s0, 30
    %v5 = vld [vmem:[%s4] sm:%s3]
    %s6 = scalar_lea.vmem [#allocation0], 120
    %7 = vst [vmem:[%s6] sm:%s3] %v5
    %s8 = scalar_lea.vmem %s0, 28
    %v9 = vld [vmem:[%s8] sm:%s3]
    %s10 = scalar_lea.vmem [#allocation0], 112
    %11 = vst [vmem:[%s10] sm:%s3] %v9
    %s12 = scalar_lea.vmem %s0, 26
    %v13 = vld [vmem:[%s12] sm:%s3]
    %s14 = scalar_lea.vmem [#allocation0], 104
    %15 = vst [vmem:[%s14] sm:%s3] %v13
    %s16 = scalar_lea.vmem %s0, 24
    %v17 = vld [vmem:[%s16] sm:%s3]
    %s18 = scalar_lea.vmem [#allocation0], 96
    %19 = vst [vmem:[%s18] sm:%s3] %v17
    %s20 = scalar_lea.vmem %s0, 22
    %v21 = vld [vmem:[%s20] sm:%s3]
    %s22 = scalar_lea.vmem [#allocation0], 88
    %23 = vst [vmem:[%s22] sm:%s3] %v21
    %s24 = scalar_lea.vmem %s0, 20
    %v25 = vld [vmem:[%s24] sm:%s3]
    %s26 = scalar_lea.vmem [#allocation0], 80
    %27 = vst [vmem:[%s26] sm:%s3] %v25
    %s28 = scalar_lea.vmem %s0, 18
    %v29 = vld [vmem:[%s28] sm:%s3]
    %s30 = scalar_lea.vmem [#allocation0], 72
    %31 = vst [vmem:[%s30] sm:%s3] %v29
    %s32 = scalar_lea.vmem %s0, 16
    %v33 = vld [vmem:[%s32] sm:%s3]
    %s34 = scalar_lea.vmem [#allocation0], 64
    %35 = vst [vmem:[%s34] sm:%s3] %v33
    %s36 = scalar_lea.vmem %s0, 14
    %v37 = vld [vmem:[%s36] sm:%s3]
    %s38 = scalar_lea.vmem [#allocation0], 56
    %39 = vst [vmem:[%s38] sm:%s3] %v37
    %s40 = scalar_lea.vmem %s0, 12
    %v41 = vld [vmem:[%s40] sm:%s3]
    %s42 = scalar_lea.vmem [#allocation0], 48
    %43 = vst [vmem:[%s42] sm:%s3] %v41
    %s44 = scalar_lea.vmem %s0, 10
    %v45 = vld [vmem:[%s44] sm:%s3]
    %s46 = scalar_lea.vmem [#allocation0], 40
    %47 = vst [vmem:[%s46] sm:%s3] %v45
    %s48 = scalar_lea.vmem %s0, 8
    %v49 = vld [vmem:[%s48] sm:%s3]
    %s50 = scalar_lea.vmem [#allocation0], 32
    %51 = vst [vmem:[%s50] sm:%s3] %v49
    %s52 = scalar_lea.vmem %s0, 6
    %v53 = vld [vmem:[%s52] sm:%s3]
    %s54 = scalar_lea.vmem [#allocation0], 24
    %55 = vst [vmem:[%s54] sm:%s3] %v53
    %s56 = scalar_lea.vmem %s0, 4
    %v57 = vld [vmem:[%s56] sm:%s3]
    %s58 = scalar_lea.vmem [#allocation0], 16
    %59 = vst [vmem:[%s58] sm:%s3] %v57
    %s60 = scalar_lea.vmem %s0, 2
    %v61 = vld [vmem:[%s60] sm:%s3]
    %s62 = scalar_lea.vmem [#allocation0], 8
    %63 = vst [vmem:[%s62] sm:%s3] %v61
    %v64 = vld [vmem:[%s0] sm:%s3]
    %65 = vst [vmem:[#allocation0] sm:%s3] %v64
    %v66 = vld [vmem:[#allocation0] ss:$8 sm:$0xf]
    %v67 = vld [vmem:[#allocation0] ss:$8 sm:$0xf0]
    %vm68 = vcmask 1047556
    %v69 = vsel %vm68, %v67, %v66
    %vm70 = vcmask 72704
    %71 = vst.msk [vmem:[%s1] sm:$0xff] %vm70, %v69
    %s72 = scalar_lea.vmem [#allocation0], 64
    %v73 = vld [vmem:[%s72] ss:$8 sm:$0xf]
    %s74 = scalar_lea.vmem [#allocation0], 64
    %v75 = vld [vmem:[%s74] ss:$8 sm:$0xf0]
    %vm76 = vcmask 1047556
    %v77 = vsel %vm76, %v75, %v73
    %vm78 = vcmask 72704
    %s79 = scalar_lea.vmem %s1, 8
    %80 = vst.msk [vmem:[%s79] sm:$0xff] %vm78, %v77
    %s81 = scalar_lea.vmem [#allocation0], 1
    %v82 = vld [vmem:[%s81] ss:$8 sm:$0xf]
    %s83 = scalar_lea.vmem [#allocation0], 1
    %v84 = vld [vmem:[%s83] ss:$8 sm:$0xf0]
    %vm85 = vcmask 1047556
    %v86 = vsel %vm85, %v84, %v82
    %87 = vrot.lane.b32.xlu0 %v86, 9
    %v88 = vpop.permute.xlu0 %87
    %vm89 = vcmask 146504
    %90 = vst.msk [vmem:[%s1] sm:$0xff] %vm89, %v88
    %s91 = scalar_lea.vmem [#allocation0], 65
    %v92 = vld [vmem:[%s91] ss:$8 sm:$0xf]
    %s93 = scalar_lea.vmem [#allocation0], 65
    %v94 = vld [vmem:[%s93] ss:$8 sm:$0xf0]
    %vm95 = vcmask 1047556
    %v96 = vsel %vm95, %v94, %v92
    %97 = vrot.lane.b32.xlu0 %v96, 9
    %v98 = vpop.permute.xlu0 %97
    %vm99 = vcmask 146504
    %s100 = scalar_lea.vmem %s1, 8
    %101 = vst.msk [vmem:[%s100] sm:$0xff] %vm99, %v98

// kernel: tile.15
$region0: #{tile.15}
  %s0 = inlined_call_operand.vmem [shape: f32[2,9,32], index: 0, kind: input, shape index: {}]
  %s1 = inlined_call_operand.vmem [shape: f32[18,32], index: 1, kind: output, shape index: {}]
  %v2 = vld [vmem:[%s0] sm:$0xff]
  %vm3 = vcmask 261120
  %4 = vst.msk [vmem:[%s1] sm:$0xff] %vm3, %v2
  %s5 = scalar_lea.vmem %s0, 8
  %s6 = smov 3
  %v7 = vld [vmem:[%s5] ss:$8 sm:%s6]
  %vm8 = vcmask 261120
  %s9 = scalar_lea.vmem %s1, 8
  %10 = vst.msk [vmem:[%s9] sm:$0x3] %vm8, %v7
  %s11 = scalar_lea.vmem %s0, 17
  %v12 = vld [vmem:[%s11] sm:$0xff]
  %vm13 = vcmask 261120
  %s14 = scalar_lea.vmem %s1, 10
  %15 = vst.msk [vmem:[%s14] sm:$0xff] %vm13, %v12

// kernel: _lambda_.2
$region0: #{_lambda_.2}
  #allocation0 [shape = 'u32[]', space=smem, size = 0x4, offset = 0x4, fixed_abs, tag = 'smem constant byte address 0x4 - core index']
  #allocation1 [shape = 'u32[72,128]{1,0:T(1,128)}', space=vmem, size = 0x9000, scoped, tag = 'internal scratch']
  %s0 = inlined_call_operand.vmem [shape: f32[18,72], index: 0, kind: input, shape index: {}]
  %s1 = inlined_call_operand.vmem [shape: f32[72,16], index: 1, kind: input, shape index: {}]
  %s2 = inlined_call_operand.vmem [shape: f32[18,16], index: 2, kind: input, shape index: {}]
  %s3 = inlined_call_operand.vmem [shape: f32[16,32], index: 3, kind: input, shape index: {}]
  %s4 = inlined_call_operand.vmem [shape: f32[1,32], index: 4, kind: input, shape index: {}]
  %s5 = inlined_call_operand.vmem [shape: f32[32,32], index: 5, kind: input, shape index: {}]
  %s6 = inlined_call_operand.vmem [shape: f32[1,32], index: 6, kind: input, shape index: {}]
  %s7 = inlined_call_operand.vmem [shape: f32[32,32], index: 7, kind: input, shape index: {}]
  %s8 = inlined_call_operand.vmem [shape: f32[1,32], index: 8, kind: input, shape index: {}]
  %s9 = inlined_call_operand.vmem [shape: f32[18,32], index: 9, kind: input, shape index: {}]
  %s10 = inlined_call_operand.vmem [shape: f32[18,32], index: 10, kind: output, shape index: {}]
  %s11 = sld [smem:[#allocation0]]
  $region50: #{_lambda_.2} parent=0
    _
  %s13 = ssub.s32 1, %s11
  %s14 = scalar_select 0, %s13, %s11
  // Predicated region
  $region2: #{_lambda_.2} parent=0 // pred_check
    _
  $region3: #{_lambda_.2} parent=0 // pred_check_branch
    %16 = sbr.rel (0) target = $region5
  $region4: #{_lambda_.2} parent=0 // pred_region
    _
  $region5: #{_lambda_.2} parent=0 // pred_fallthru
    _
  // Predicated region
  $region6: #{_lambda_.2} parent=0 // pred_check
    _
  $region7: #{_lambda_.2} parent=0 // pred_check_branch
    %18 = sbr.rel (0) target = $region9
  $region8: #{_lambda_.2} parent=0 // pred_region
    _
  $region9: #{_lambda_.2} parent=0 // pred_fallthru
    _
  // Predicated region
  $region10: #{_lambda_.2} parent=0 // pred_check
    _
  $region11: #{_lambda_.2} parent=0 // pred_check_branch
    %20 = sbr.rel (0) target = $region13
  $region12: #{_lambda_.2} parent=0 // pred_region
    _
  $region13: #{_lambda_.2} parent=0 // pred_fallthru
    _
  // Predicated region
  $region14: #{_lambda_.2} parent=0 // pred_check
    _
  $region15: #{_lambda_.2} parent=0 // pred_check_branch
    %22 = sbr.rel (0) target = $region17
  $region16: #{_lambda_.2} parent=0 // pred_region
    _
  $region17: #{_lambda_.2} parent=0 // pred_fallthru
    _
  // Predicated region
  $region18: #{_lambda_.2} parent=0 // pred_check
    _
  $region19: #{_lambda_.2} parent=0 // pred_check_branch
    %24 = sbr.rel (0) target = $region21
  $region20: #{_lambda_.2} parent=0 // pred_region
    _
  $region21: #{_lambda_.2} parent=0 // pred_fallthru
    _
  // Predicated region
  $region22: #{_lambda_.2} parent=0 // pred_check
    _
  $region23: #{_lambda_.2} parent=0 // pred_check_branch
    %26 = sbr.rel (0) target = $region25
  $region24: #{_lambda_.2} parent=0 // pred_region
    _
  $region25: #{_lambda_.2} parent=0 // pred_fallthru
    _
  // Predicated region
  $region26: #{_lambda_.2} parent=0 // pred_check
    _
  $region27: #{_lambda_.2} parent=0 // pred_check_branch
    %28 = sbr.rel (0) target = $region29
  $region28: #{_lambda_.2} parent=0 // pred_region
    _
  $region29: #{_lambda_.2} parent=0 // pred_fallthru
    _
  // Predicated region
  $region30: #{_lambda_.2} parent=0 // pred_check
    _
  $region31: #{_lambda_.2} parent=0 // pred_check_branch
    %30 = sbr.rel (0) target = $region33
  $region32: #{_lambda_.2} parent=0 // pred_region
    _
  $region33: #{_lambda_.2} parent=0 // pred_fallthru
    _
  // Predicated region
  $region34: #{_lambda_.2} parent=0 // pred_check
    _
  $region35: #{_lambda_.2} parent=0 // pred_check_branch
    %32 = sbr.rel (0) target = $region37
  $region36: #{_lambda_.2} parent=0 // pred_region
    _
  $region37: #{_lambda_.2} parent=0 // pred_fallthru
    _
  // Predicated region
  $region38: #{_lambda_.2} parent=0 // pred_check
    _
  $region39: #{_lambda_.2} parent=0 // pred_check_branch
    %34 = sbr.rel (0) target = $region41
  $region40: #{_lambda_.2} parent=0 // pred_region
    _
  $region41: #{_lambda_.2} parent=0 // pred_fallthru
    _
  %v35 = vld [vmem:[%s0] sm:$0xff]
  %v36 = vld [vmem:[%s0 + $0x8] sm:$0xff]
  %v37 = vld [vmem:[%s0 + $0x10] sm:$0x3]
  %v38 = vld [vmem:[%s1] sm:$0xff]
  %v39 = vld [vmem:[%s1 + $0x8] sm:$0xff]
  %v40 = vld [vmem:[%s1 + $0x10] sm:$0xff]
  %v41 = vld [vmem:[%s1 + $0x18] sm:$0xff]
  %v42 = vld [vmem:[%s1 + $0x20] sm:$0xff]
  %v43 = vld [vmem:[%s1 + $0x28] sm:$0xff]
  %v44 = vld [vmem:[%s1 + $0x30] sm:$0xff]
  %v45 = vld [vmem:[%s1 + $0x38] sm:$0xff]
  %v46 = vld [vmem:[%s1 + $0x40] sm:$0xff]
  %v47 = vld [vmem:[%s2] sm:$0xff]
  %v48 = vld [vmem:[%s2 + $0x8] sm:$0xff]
  %v49 = vld [vmem:[%s2 + $0x10] sm:$0x3]
  %vm50 = vcmask 588800
  %v52 = vsel %vm50, %v35, 0
  %v55 = vsel %vm50, %v36, 0
  %v58 = vsel %vm50, %v37, 0
  %60 = vmatpush.msra.mxu0 0.0
  %61 = vmatpush.msra.mxu0 0.0
  %62 = vmatpush.msra.mxu0 0.0
  %63 = vmatpush.msra.mxu0 0.0
  %64 = vmatpush.msra.mxu0 0.0
  %65 = vmatpush.msra.mxu0 0.0
  %66 = vmatpush.msra.mxu0 0.0
  %67 = vmatpush.msra.mxu0 %v46
  %68 = vmatpush.msra.mxu0 %v45
  %69 = vmatpush.msra.mxu0 %v44
  %70 = vmatpush.msra.mxu0 %v43
  %71 = vmatpush.msra.mxu0 %v42
  %72 = vmatpush.msra.mxu0 %v41
  %73 = vmatpush.msra.mxu0 %v40
  %74 = vmatpush.msra.mxu0 %v39
  %75 = vmatpush.msra.mxu0 %v38
  %76 = vmatmul.f32.gmra.mxu0 %v52
  %v77 = vpop.f32.mrf.mxu0
  %v78 = vadd.f32 %v47, %v77
  %79 = vmatmul.f32.gmra.mxu0 %v55
  %v80 = vpop.f32.mrf.mxu0
  %v81 = vadd.f32 %v48, %v80
  %82 = vmatmul.f32.gmra.mxu0 %v58
  %v83 = vpop.f32.mrf.mxu0
  %v84 = vadd.f32 %v49, %v83
  %85 = vdwg.mxu0
  %vm86 = vcmp.ge.f32.partialorder %v78, 0.0
  %vm87 = vcmp.ge.f32.partialorder %v81, 0.0
  %vm88 = vcmp.ge.f32.partialorder %v84, 0.0
  %v89 = vmul.f32 %v78, 0.01
  %v90 = vmul.f32 %v81, 0.01
  %v91 = vmul.f32 %v84, 0.01
  %v92 = vsel %vm86, %v78, %v89
  %v93 = vsel %vm87, %v81, %v90
  %v94 = vsel %vm88, %v84, %v91
  %v95 = vld [vmem:[%s3] sm:$0xff]
  %v96 = vld [vmem:[%s3 + $0x8] sm:$0xff]
  %v97 = vld [vmem:[%s4] sm:$0x1]
  %v99 = vperm.slane %v97, 0
  %vm101 = vcmask 130048
  %v103 = vsel %vm101, %v92, 0
  %v106 = vsel %vm101, %v93, 0
  %v109 = vsel %vm101, %v94, 0
  %111 = vmatpush.msra.mxu0 0.0
  %112 = vmatpush.msra.mxu0 0.0
  %113 = vmatpush.msra.mxu0 0.0
  %114 = vmatpush.msra.mxu0 0.0
  %115 = vmatpush.msra.mxu0 0.0
  %116 = vmatpush.msra.mxu0 0.0
  %117 = vmatpush.msra.mxu0 0.0
  %118 = vmatpush.msra.mxu0 0.0
  %119 = vmatpush.msra.mxu0 0.0
  %120 = vmatpush.msra.mxu0 0.0
  %121 = vmatpush.msra.mxu0 0.0
  %122 = vmatpush.msra.mxu0 0.0
  %123 = vmatpush.msra.mxu0 0.0
  %124 = vmatpush.msra.mxu0 0.0
  %125 = vmatpush.msra.mxu0 %v96
  %126 = vmatpush.msra.mxu0 %v95
  %127 = vmatmul.f32.gmra.mxu0 %v103
  %v128 = vpop.f32.mrf.mxu0
  %v129 = vadd.f32 %v99, %v128
  %130 = vmatmul.f32.gmra.mxu0 %v106
  %v131 = vpop.f32.mrf.mxu0
  %v132 = vadd.f32 %v99, %v131
  %133 = vmatmul.f32.gmra.mxu0 %v109
  %v134 = vpop.f32.mrf.mxu0
  %v135 = vadd.f32 %v99, %v134
  %136 = vdwg.mxu0
  %vm137 = vcmp.ge.f32.partialorder %v129, 0.0
  %vm138 = vcmp.ge.f32.partialorder %v132, 0.0
  %vm139 = vcmp.ge.f32.partialorder %v135, 0.0
  %v140 = vmul.f32 %v129, 0.01
  %v141 = vmul.f32 %v132, 0.01
  %v142 = vmul.f32 %v135, 0.01
  %v143 = vsel %vm137, %v129, %v140
  %v144 = vsel %vm138, %v132, %v141
  %v145 = vsel %vm139, %v135, %v142
  %v146 = vld [vmem:[%s5] sm:$0xff]
  %v147 = vld [vmem:[%s5 + $0x8] sm:$0xff]
  %v148 = vld [vmem:[%s5 + $0x10] sm:$0xff]
  %v149 = vld [vmem:[%s5 + $0x18] sm:$0xff]
  %v150 = vld [vmem:[%s6] sm:$0x1]
  %v152 = vperm.slane %v150, 0
  %vm154 = vcmask 261120
  %v156 = vsel %vm154, %v143, 0
  %v159 = vsel %vm154, %v144, 0
  %v162 = vsel %vm154, %v145, 0
  %164 = vmatpush.msra.mxu0 0.0
  %165 = vmatpush.msra.mxu0 0.0
  %166 = vmatpush.msra.mxu0 0.0
  %167 = vmatpush.msra.mxu0 0.0
  %168 = vmatpush.msra.mxu0 0.0
  %169 = vmatpush.msra.mxu0 0.0
  %170 = vmatpush.msra.mxu0 0.0
  %171 = vmatpush.msra.mxu0 0.0
  %172 = vmatpush.msra.mxu0 0.0
  %173 = vmatpush.msra.mxu0 0.0
  %174 = vmatpush.msra.mxu0 0.0
  %175 = vmatpush.msra.mxu0 0.0
  %176 = vmatpush.msra.mxu0 %v149
  %177 = vmatpush.msra.mxu0 %v148
  %178 = vmatpush.msra.mxu0 %v147
  %179 = vmatpush.msra.mxu0 %v146
  %180 = vmatmul.f32.gmra.mxu0 %v156
  %v181 = vpop.f32.mrf.mxu0
  %v182 = vadd.f32 %v152, %v181
  %183 = vmatmul.f32.gmra.mxu0 %v159
  %v184 = vpop.f32.mrf.mxu0
  %v185 = vadd.f32 %v152, %v184
  %186 = vmatmul.f32.gmra.mxu0 %v162
  %v187 = vpop.f32.mrf.mxu0
  %v188 = vadd.f32 %v152, %v187
  %189 = vdwg.mxu0
  %vm190 = vcmp.ge.f32.partialorder %v182, 0.0
  %vm191 = vcmp.ge.f32.partialorder %v185, 0.0
  %vm192 = vcmp.ge.f32.partialorder %v188, 0.0
  %v193 = vmul.f32 %v182, 0.01
  %v194 = vmul.f32 %v185, 0.01
  %v195 = vmul.f32 %v188, 0.01
  %v196 = vsel %vm190, %v182, %v193
  %v197 = vsel %vm191, %v185, %v194
  %v198 = vsel %vm192, %v188, %v195
  %v199 = vld [vmem:[%s7] sm:$0xff]
  %v200 = vld [vmem:[%s7 + $0x8] sm:$0xff]
  %v201 = vld [vmem:[%s7 + $0x10] sm:$0xff]
  %v202 = vld [vmem:[%s7 + $0x18] sm:$0xff]
  %v203 = vld [vmem:[%s8] sm:$0x1]
  %v205 = vperm.slane %v203, 0
  %v208 = vsel %vm154, %v196, 0
  %v211 = vsel %vm154, %v197, 0
  %v214 = vsel %vm154, %v198, 0
  %216 = vmatpush.msra.mxu0 0.0
  %217 = vmatpush.msra.mxu0 0.0
  %218 = vmatpush.msra.mxu0 0.0
  %219 = vmatpush.msra.mxu0 0.0
  %220 = vmatpush.msra.mxu0 0.0
  %221 = vmatpush.msra.mxu0 0.0
  %222 = vmatpush.msra.mxu0 0.0
  %223 = vmatpush.msra.mxu0 0.0
  %224 = vmatpush.msra.mxu0 0.0
  %225 = vmatpush.msra.mxu0 0.0
  %226 = vmatpush.msra.mxu0 0.0
  %227 = vmatpush.msra.mxu0 0.0
  %228 = vmatpush.msra.mxu0 %v202
  %229 = vmatpush.msra.mxu0 %v201
  %230 = vmatpush.msra.mxu0 %v200
  %231 = vmatpush.msra.mxu0 %v199
  %232 = vmatmul.f32.gmra.mxu0 %v208
  %v233 = vpop.f32.mrf.mxu0
  %v234 = vadd.f32 %v205, %v233
  %235 = vmatmul.f32.gmra.mxu0 %v211
  %v236 = vpop.f32.mrf.mxu0
  %v237 = vadd.f32 %v205, %v236
  %238 = vmatmul.f32.gmra.mxu0 %v214
  %v239 = vpop.f32.mrf.mxu0
  %v240 = vadd.f32 %v205, %v239
  %241 = vdwg.mxu0
  %v242 = vld [vmem:[%s9] sm:$0xff]
  %v243 = vld [vmem:[%s9 + $0x8] sm:$0xff]
  %v244 = vld [vmem:[%s9 + $0x10] sm:$0x3]
  %v245 = vadd.f32 %v234, %v242
  %v246 = vadd.f32 %v237, %v243
  %v247 = vadd.f32 %v240, %v244
  %248 = vst.msk [vmem:[%s10] sm:$0xff] %vm154, %v245
  %249 = vst.msk [vmem:[%s10 + $0x8] sm:$0xff] %vm154, %v246
  %vm250 = vcmask 254976
  %251 = vst.msk [vmem:[%s10 + $0x10] sm:$0x3] %vm250, %v247
  // Predicated region
  $region42: #{_lambda_.2} parent=0 // pred_check
    _
  $region43: #{_lambda_.2} parent=0 // pred_check_branch
    %253 = sbr.rel (0) target = $region45
  $region44: #{_lambda_.2} parent=0 // pred_region
    _
  $region45: #{_lambda_.2} parent=0 // pred_fallthru
    _
  // Predicated region
  $region46: #{_lambda_.2} parent=0 // pred_check
    _
  $region47: #{_lambda_.2} parent=0 // pred_check_branch
    %255 = sbr.rel (0) target = $region49
  $region48: #{_lambda_.2} parent=0 // pred_region
    _
  $region49: #{_lambda_.2} parent=0 // pred_fallthru
    _

// kernel: _lambda_.3
$region0: #{_lambda_.3}
  #allocation0 [shape = 'u32[]', space=smem, size = 0x4, offset = 0x4, fixed_abs, tag = 'smem constant byte address 0x4 - core index']
  #allocation1 [shape = 'u32[72,128]{1,0:T(1,128)}', space=vmem, size = 0x9000, scoped, tag = 'internal scratch']
  %s0 = inlined_call_operand.vmem [shape: f32[2,8,72], index: 0, kind: input, shape index: {}]
  %s1 = inlined_call_operand.vmem [shape: f32[8,1], index: 1, kind: input, shape index: {}]
  %s2 = inlined_call_operand.vmem [shape: f32[2,1,18,8,18], index: 2, kind: input, shape index: {}]
  %s3 = inlined_call_operand.vmem [shape: f32[2,16,8,16], index: 3, kind: output, shape index: {}]
  %s4 = sld [smem:[#allocation0]]
  $region45: #{_lambda_.3} parent=0
    _
  %s6 = ssub.s32 1, %s4
  %s7 = scalar_select 0, %s6, %s4
  loop: start=0, step=1, limit=4
  $region2: #{_lambda_.3} parent=0 // loop_pre_header
    _
  $region3: #{_lambda_.3} parent=0 // loop_header
    %s9 = sphi 0, %s13
    %p10 = scmp.ge.s32.totalorder %s9, 4
    %s16 = sphi 0, %s28
    %s17 = sphi 0, %s24
    %s18 = sphi 0, %s16
    %s19 = sphi 0, %s17
    %s20 = sphi 0, %s18
    %s21 = sphi 0, %s19
    %s31 = sphi 0, %s33
    %s34 = sphi 0, %s31
    %s35 = sphi 0, %s34
    %s51 = sphi 0, %s35
    %s55 = sphi 0, %s55
    %s57 = sphi 0, %s55
    %s58 = sphi 0, %s57
    %s72 = sphi 0, %s58
    %s78 = sphi 0, %s80
    %s81 = sphi 0, %s78
    %s82 = sphi 0, %s81
    %s98 = sphi 0, %s82
    %s106 = sphi 0, %s108
    %s109 = sphi 0, %s106
    %s110 = sphi 0, %s109
    %s126 = sphi 0, %s110
  $region4: #{_lambda_.3} parent=0 // loop_header_branch
    %12 = sbr.rel (%p10) target = $region8
  $region5: #{_lambda_.3} parent=0 // loop_body
    %s14 = ssub.s32 %s9, 1
    %s15 = ssub.s32 %s9, 2
    %s22 = sadd.s32 1, %s17
    %p23 = scmp.ge.s32.totalorder %s22, 1
    %s24 = scalar_select %p23, 0, %s22
    %s25 = sadd.s32 1, %s16
    %s26 = scalar_select %p23, %s25, %s16
    %p27 = scmp.ge.s32.totalorder %s26, 2
    %s28 = scalar_select %p27, 0, %s26
    %s29 = ssub.s32 %s16, %s28
    %p30 = scmp.eq.s32.totalorder %s29, 0
    %s32 = sadd.s32 %s31, 1
    %s33 = scalar_select %p30, %s31, %s32
    %p36 = pneg %p30
    %p37 = scmp.eq.s32.totalorder %s9, 1
    %p38 = por %p36, %p37
    %p39 = scmp.ne.s32.totalorder %s31, %s34
    %p40 = scmp.eq.s32.totalorder %s9, 0
    %p41 = por %p39, %p40
    %p42 = scmp.ne.s32.totalorder %s31, %s34
    %p43 = scmp.eq.s32.totalorder %s14, 1
    %p44 = por %p42, %p43
    %p45 = scmp.ne.s32.totalorder %s34, %s35
    %p46 = scmp.eq.s32.totalorder %s14, 0
    %p47 = por %p45, %p46
    %p48 = scmp.ne.s32.totalorder %s34, %s35
    %p49 = scmp.eq.s32.totalorder %s15, 1
    %p50 = por %p48, %p49
    %p52 = scmp.ne.s32.totalorder %s35, %s51
    %p53 = scmp.eq.s32.totalorder %s15, 0
    %p54 = por %p52, %p53
    %s56 = sadd.s32 %s55, 1
    %p59 = scmp.eq.s32.totalorder %s9, 1
    %p60 = scmp.ne.s32.totalorder %s55, %s57
    %p61 = scmp.eq.s32.totalorder %s9, 0
    %p62 = por %p60, %p61
    %p63 = scmp.ne.s32.totalorder %s55, %s57
    %p64 = scmp.eq.s32.totalorder %s14, 1
    %p65 = por %p63, %p64
    %p66 = scmp.ne.s32.totalorder %s57, %s58
    %p67 = scmp.eq.s32.totalorder %s14, 0
    %p68 = por %p66, %p67
    %p69 = scmp.ne.s32.totalorder %s57, %s58
    %p70 = scmp.eq.s32.totalorder %s15, 1
    %p71 = por %p69, %p70
    %p73 = scmp.ne.s32.totalorder %s58, %s72
    %p74 = scmp.eq.s32.totalorder %s15, 0
    %p75 = por %p73, %p74
    %s76 = ssub.s32 %s16, %s28
    %p77 = scmp.eq.s32.totalorder %s76, 0
    %s79 = sadd.s32 %s78, 1
    %s80 = scalar_select %p77, %s78, %s79
    %p83 = pneg %p77
    %p84 = scmp.eq.s32.totalorder %s9, 1
    %p85 = por %p83, %p84
    %p86 = scmp.ne.s32.totalorder %s78, %s81
    %p87 = scmp.eq.s32.totalorder %s9, 0
    %p88 = por %p86, %p87
    %p89 = scmp.ne.s32.totalorder %s78, %s81
    %p90 = scmp.eq.s32.totalorder %s14, 1
    %p91 = por %p89, %p90
    %p92 = scmp.ne.s32.totalorder %s81, %s82
    %p93 = scmp.eq.s32.totalorder %s14, 0
    %p94 = por %p92, %p93
    %p95 = scmp.ne.s32.totalorder %s81, %s82
    %p96 = scmp.eq.s32.totalorder %s15, 1
    %p97 = por %p95, %p96
    %p99 = scmp.ne.s32.totalorder %s82, %s98
    %p100 = scmp.eq.s32.totalorder %s15, 0
    %p101 = por %p99, %p100
    %s102 = ssub.s32 %s16, %s28
    %s103 = ssub.s32 %s17, %s24
    %s104 = sor.u32 %s102, %s103
    %p105 = scmp.eq.s32.totalorder %s104, 0
    %s107 = sadd.s32 %s106, 1
    %s108 = scalar_select %p105, %s106, %s107
    %p111 = pneg %p105
    %p112 = scmp.eq.s32.totalorder %s9, 1
    %p113 = por %p111, %p112
    %p114 = scmp.ne.s32.totalorder %s106, %s109
    %p115 = scmp.eq.s32.totalorder %s9, 0
    %p116 = por %p114, %p115
    %p117 = scmp.ne.s32.totalorder %s106, %s109
    %p118 = scmp.eq.s32.totalorder %s14, 1
    %p119 = por %p117, %p118
    %p120 = scmp.ne.s32.totalorder %s109, %s110
    %p121 = scmp.eq.s32.totalorder %s14, 0
    %p122 = por %p120, %p121
    %p123 = scmp.ne.s32.totalorder %s109, %s110
    %p124 = scmp.eq.s32.totalorder %s15, 1
    %p125 = por %p123, %p124
    %p127 = scmp.ne.s32.totalorder %s110, %s126
    %p128 = scmp.eq.s32.totalorder %s15, 0
    %p129 = por %p127, %p128
    %p130 = scmp.le.s32.totalorder 1, %s9
    %p131 = scmp.lt.s32.totalorder %s9, 3
    %p132 = pnand %p130, %p131
    %p133 = pneg %p132
    // Predicated region
    $region9: #{_lambda_.3} parent=5 // pred_check
      _
    $region10: #{_lambda_.3} parent=5 // pred_check_branch
      %135 = sbr.rel (%p132) target = $region12
    $region11: #{_lambda_.3} parent=5 // pred_region
      %s136 = ssub.s32 %s9, 1
      // Predicated region
      $region13: #{_lambda_.3} parent=11 // pred_check
        %p137 = pneg %p68
      $region14: #{_lambda_.3} parent=11 // pred_check_branch
        %139 = sbr.rel (%p137) target = $region16
      $region15: #{_lambda_.3} parent=11 // pred_region
        _
      $region16: #{_lambda_.3} parent=11 // pred_fallthru
        _
      // Predicated region
      $region17: #{_lambda_.3} parent=11 // pred_check
        %p140 = pneg %p94
      $region18: #{_lambda_.3} parent=11 // pred_check_branch
        %142 = sbr.rel (%p140) target = $region20
      $region19: #{_lambda_.3} parent=11 // pred_region
        %p143 = scmp.lt.s32.totalorder %s18, 1
        %s144 = scalar_select %p143, %s18, 1
        %s145 = smul.addr %s144, 18
        %s146 = smul.addr %s145, 8
        %s147 = scalar_lea.vmem %s2, %s146
      $region20: #{_lambda_.3} parent=11 // pred_fallthru
        _
    $region12: #{_lambda_.3} parent=5 // pred_fallthru
      _
    %p148 = scmp.lt.s32.totalorder %s9, 2
    // Predicated region
    $region21: #{_lambda_.3} parent=5 // pred_check
      %p149 = pneg %p148
    $region22: #{_lambda_.3} parent=5 // pred_check_branch
      %151 = sbr.rel (%p149) target = $region24
    $region23: #{_lambda_.3} parent=5 // pred_region
      // Predicated region
      $region25: #{_lambda_.3} parent=23 // pred_check
        %p152 = pneg %p41
      $region26: #{_lambda_.3} parent=23 // pred_check_branch
        %154 = sbr.rel (%p152) target = $region28
      $region27: #{_lambda_.3} parent=23 // pred_region
        %p155 = scmp.lt.s32.totalorder %s16, 1
        %s156 = scalar_select %p155, %s16, 1
        %s157 = smul.addr %s156, 8
        %s158 = scalar_lea.vmem %s0, %s157
      $region28: #{_lambda_.3} parent=23 // pred_fallthru
        _
    $region24: #{_lambda_.3} parent=5 // pred_fallthru
      _
    %p159 = scmp.le.s32.totalorder 1, %s9
    %p160 = scmp.lt.s32.totalorder %s9, 3
    %p161 = pnand %p159, %p160
    %p162 = pneg %p161
    // Predicated region
    $region29: #{_lambda_.3} parent=5 // pred_check
      _
    $region30: #{_lambda_.3} parent=5 // pred_check_branch
      %164 = sbr.rel (%p161) target = $region32
    $region31: #{_lambda_.3} parent=5 // pred_region
      %s165 = ssub.s32 %s9, 1
      %p166 = scmp.lt.s32.totalorder %s18, 1
      %s167 = scalar_select %p166, %s18, 1
      %s168 = smul.addr %s167, 8
      %s169 = scalar_lea.vmem %s0, %s168
      %p170 = pneg %p47
      %p171 = pneg %p44
      %p172 = pneg %p68
      %p173 = pneg %p65
      %p174 = scmp.lt.s32.totalorder %s18, 1
      %s175 = scalar_select %p174, %s18, 1
      %s176 = smul.addr %s175, 18
      %s177 = smul.addr %s176, 8
      %s178 = scalar_lea.vmem %s2, %s177
      %p179 = pneg %p94
      %p180 = pneg %p91
      %p181 = pneg %p122
      %p182 = pneg %p119
      %s183 = smul.u32 16, %s19
      %p184 = scmp.lt.s32.totalorder %s18, 1
      %s185 = scalar_select %p184, %s18, 1
      %p186 = scmp.lt.s32.totalorder %s183, 15
      %s187 = scalar_select %p186, %s183, 15
      %s188 = smul.addr %s185, 16
      %s189 = sadd.s32 %s187, %s188
      %s190 = smul.addr %s189, 8
      %s191 = scalar_lea.vmem %s3, %s190
      %p192 = scmp.lt.s32.totalorder %s18, 1
      %s193 = scalar_select %p192, %s18, 1
      %s194 = smul.addr %s193, 8
      %s195 = scalar_lea.vmem %s0, %s194
      %p196 = scmp.lt.s32.totalorder %s18, 1
      %s197 = scalar_select %p196, %s18, 1
      %s198 = smul.addr %s197, 18
      %s199 = smul.addr %s198, 8
      %s200 = scalar_lea.vmem %s2, %s199
      %s201 = smul.u32 16, %s19
      %p202 = scmp.lt.s32.totalorder %s18, 1
      %s203 = scalar_select %p202, %s18, 1
      %p204 = scmp.lt.s32.totalorder %s201, 15
      %s205 = scalar_select %p204, %s201, 15
      %s206 = smul.addr %s203, 16
      %s207 = sadd.s32 %s205, %s206
      %s208 = smul.addr %s207, 8
      %s209 = scalar_lea.vmem %s3, %s208
      %s210 = smul.u32 16, %s19
      %s211 = smul.u32 %s19, 16
      %v212 = vld [vmem:[%s195] sm:$0xff]
      %v213 = vld [vmem:[%s1] sm:$0xff]
      %215 = vset.pattern.permute.xlu0 0
      %216 = vperm.xlu0 %215, %v213
      %v217 = vpop.permute.xlu0 %216
      %s219 = smul.u32 %s211, 8
      %s220 = scalar_lea.vmem %s200, %s219
      %v221 = vld [vmem:[%s220] sm:$0xff]
      %s222 = sadd.s32 %s211, 1
      %s223 = smul.u32 %s222, 8
      %s224 = scalar_lea.vmem %s200, %s223
      %v225 = vld [vmem:[%s224] sm:$0xff]
      %s226 = sadd.s32 %s211, 2
      %s227 = smul.u32 %s226, 8
      %s228 = scalar_lea.vmem %s200, %s227
      %v229 = vld [vmem:[%s228] sm:$0xff]
      %231 = vrot.lane.b32.xlu0 %v221, 127
      %v232 = vpop.permute.xlu0 %231
      %234 = vrot.lane.b32.xlu0 %v221, 126
      %v235 = vpop.permute.xlu0 %234
      %238 = vrot.lane.b32.xlu0 %v225, 127
      %v239 = vpop.permute.xlu0 %238
      %241 = vrot.lane.b32.xlu0 %v225, 126
      %v242 = vpop.permute.xlu0 %241
      %245 = vrot.lane.b32.xlu0 %v229, 127
      %v246 = vpop.permute.xlu0 %245
      %248 = vrot.lane.b32.xlu0 %v229, 126
      %v249 = vpop.permute.xlu0 %248
      %vm251 = vcmask 588800
      %v253 = vsel %vm251, %v212, 0
      %255 = vmatpush.msra.mxu0 0.0
      %256 = vmatpush.msra.mxu0 0.0
      %257 = vmatpush.msra.mxu0 0.0
      %258 = vmatpush.msra.mxu0 0.0
      %259 = vmatpush.msra.mxu0 0.0
      %260 = vmatpush.msra.mxu0 0.0
      %261 = vmatpush.msra.mxu0 0.0
      %262 = vmatpush.msra.mxu0 %v249
      %263 = vmatpush.msra.mxu0 %v246
      %264 = vmatpush.msra.mxu0 %v229
      %265 = vmatpush.msra.mxu0 %v242
      %266 = vmatpush.msra.mxu0 %v239
      %267 = vmatpush.msra.mxu0 %v225
      %268 = vmatpush.msra.mxu0 %v235
      %269 = vmatpush.msra.mxu0 %v232
      %270 = vmatpush.msra.mxu0 %v221
      %271 = vmatmul.f32.gmra.mxu0 %v253
      %v272 = vpop.f32.mrf.mxu0
      %v273 = vadd.f32 0.0, %v272
      %274 = vdwg.mxu0
      %v275 = vadd.f32 %v217, %v273
      %vm276 = vcmask 130048
      %277 = vst.msk [vmem:[%s209] sm:$0xff] %vm276, %v275
      %s278 = sadd.s32 %s211, 3
      %s279 = smul.u32 %s278, 8
      %s280 = scalar_lea.vmem %s200, %s279
      %v281 = vld [vmem:[%s280] sm:$0xff]
      %283 = vrot.lane.b32.xlu0 %v281, 127
      %v284 = vpop.permute.xlu0 %283
      %286 = vrot.lane.b32.xlu0 %v281, 126
      %v287 = vpop.permute.xlu0 %286
      %289 = vmatpush.msra.mxu0 0.0
      %290 = vmatpush.msra.mxu0 0.0
      %291 = vmatpush.msra.mxu0 0.0
      %292 = vmatpush.msra.mxu0 0.0
      %293 = vmatpush.msra.mxu0 0.0
      %294 = vmatpush.msra.mxu0 0.0
      %295 = vmatpush.msra.mxu0 0.0
      %296 = vmatpush.msra.mxu0 %v287
      %297 = vmatpush.msra.mxu0 %v284
      %298 = vmatpush.msra.mxu0 %v281
      %299 = vmatpush.msra.mxu0 %v249
      %300 = vmatpush.msra.mxu0 %v246
      %301 = vmatpush.msra.mxu0 %v229
      %302 = vmatpush.msra.mxu0 %v242
      %303 = vmatpush.msra.mxu0 %v239
      %304 = vmatpush.msra.mxu0 %v225
      %305 = vmatmul.f32.gmra.mxu0 %v253
      %v306 = vpop.f32.mrf.mxu0
      %v307 = vadd.f32 0.0, %v306
      %308 = vdwg.mxu0
      %v309 = vadd.f32 %v217, %v307
      %s310 = scalar_lea.vmem %s209, 8
      %311 = vst.msk [vmem:[%s310] sm:$0xff] %vm276, %v309
      %s312 = sadd.s32 %s211, 4
      %s313 = smul.u32 %s312, 8
      %s314 = scalar_lea.vmem %s200, %s313
      %v315 = vld [vmem:[%s314] sm:$0xff]
      %317 = vrot.lane.b32.xlu0 %v315, 127
      %v318 = vpop.permute.xlu0 %317
      %320 = vrot.lane.b32.xlu0 %v315, 126
      %v321 = vpop.permute.xlu0 %320
      %323 = vmatpush.msra.mxu0 0.0
      %324 = vmatpush.msra.mxu0 0.0
      %325 = vmatpush.msra.mxu0 0.0
      %326 = vmatpush.msra.mxu0 0.0
      %327 = vmatpush.msra.mxu0 0.0
      %328 = vmatpush.msra.mxu0 0.0
      %329 = vmatpush.msra.mxu0 0.0
      %330 = vmatpush.msra.mxu0 %v321
      %331 = vmatpush.msra.mxu0 %v318
      %332 = vmatpush.msra.mxu0 %v315
      %333 = vmatpush.msra.mxu0 %v287
      %334 = vmatpush.msra.mxu0 %v284
      %335 = vmatpush.msra.mxu0 %v281
      %336 = vmatpush.msra.mxu0 %v249
      %337 = vmatpush.msra.mxu0 %v246
      %338 = vmatpush.msra.mxu0 %v229
      %339 = vmatmul.f32.gmra.mxu0 %v253
      %v340 = vpop.f32.mrf.mxu0
      %v341 = vadd.f32 0.0, %v340
      %342 = vdwg.mxu0
      %v343 = vadd.f32 %v217, %v341
      %s344 = scalar_lea.vmem %s209, 16
      %345 = vst.msk [vmem:[%s344] sm:$0xff] %vm276, %v343
      %s346 = sadd.s32 %s211, 5
      %s347 = smul.u32 %s346, 8
      %s348 = scalar_lea.vmem %s200, %s347
      %v349 = vld [vmem:[%s348] sm:$0xff]
      %351 = vrot.lane.b32.xlu0 %v349, 127
      %v352 = vpop.permute.xlu0 %351
      %354 = vrot.lane.b32.xlu0 %v349, 126
      %v355 = vpop.permute.xlu0 %354
      %357 = vmatpush.msra.mxu0 0.0
      %358 = vmatpush.msra.mxu0 0.0
      %359 = vmatpush.msra.mxu0 0.0
      %360 = vmatpush.msra.mxu0 0.0
      %361 = vmatpush.msra.mxu0 0.0
      %362 = vmatpush.msra.mxu0 0.0
      %363 = vmatpush.msra.mxu0 0.0
      %364 = vmatpush.msra.mxu0 %v355
      %365 = vmatpush.msra.mxu0 %v352
      %366 = vmatpush.msra.mxu0 %v349
      %367 = vmatpush.msra.mxu0 %v321
      %368 = vmatpush.msra.mxu0 %v318
      %369 = vmatpush.msra.mxu0 %v315
      %370 = vmatpush.msra.mxu0 %v287
      %371 = vmatpush.msra.mxu0 %v284
      %372 = vmatpush.msra.mxu0 %v281
      %373 = vmatmul.f32.gmra.mxu0 %v253
      %v374 = vpop.f32.mrf.mxu0
      %v375 = vadd.f32 0.0, %v374
      %376 = vdwg.mxu0
      %v377 = vadd.f32 %v217, %v375
      %s378 = scalar_lea.vmem %s209, 24
      %379 = vst.msk [vmem:[%s378] sm:$0xff] %vm276, %v377
      %s380 = sadd.s32 %s211, 6
      %s381 = smul.u32 %s380, 8
      %s382 = scalar_lea.vmem %s200, %s381
      %v383 = vld [vmem:[%s382] sm:$0xff]
      %385 = vrot.lane.b32.xlu0 %v383, 127
      %v386 = vpop.permute.xlu0 %385
      %388 = vrot.lane.b32.xlu0 %v383, 126
      %v389 = vpop.permute.xlu0 %388
      %391 = vmatpush.msra.mxu0 0.0
      %392 = vmatpush.msra.mxu0 0.0
      %393 = vmatpush.msra.mxu0 0.0
      %394 = vmatpush.msra.mxu0 0.0
      %395 = vmatpush.msra.mxu0 0.0
      %396 = vmatpush.msra.mxu0 0.0
      %397 = vmatpush.msra.mxu0 0.0
      %398 = vmatpush.msra.mxu0 %v389
      %399 = vmatpush.msra.mxu0 %v386
      %400 = vmatpush.msra.mxu0 %v383
      %401 = vmatpush.msra.mxu0 %v355
      %402 = vmatpush.msra.mxu0 %v352
      %403 = vmatpush.msra.mxu0 %v349
      %404 = vmatpush.msra.mxu0 %v321
      %405 = vmatpush.msra.mxu0 %v318
      %406 = vmatpush.msra.mxu0 %v315
      %407 = vmatmul.f32.gmra.mxu0 %v253
      %v408 = vpop.f32.mrf.mxu0
      %v409 = vadd.f32 0.0, %v408
      %410 = vdwg.mxu0
      %v411 = vadd.f32 %v217, %v409
      %s412 = scalar_lea.vmem %s209, 32
      %413 = vst.msk [vmem:[%s412] sm:$0xff] %vm276, %v411
      %s414 = sadd.s32 %s211, 7
      %s415 = smul.u32 %s414, 8
      %s416 = scalar_lea.vmem %s200, %s415
      %v417 = vld [vmem:[%s416] sm:$0xff]
      %419 = vrot.lane.b32.xlu0 %v417, 127
      %v420 = vpop.permute.xlu0 %419
      %422 = vrot.lane.b32.xlu0 %v417, 126
      %v423 = vpop.permute.xlu0 %422
      %425 = vmatpush.msra.mxu0 0.0
      %426 = vmatpush.msra.mxu0 0.0
      %427 = vmatpush.msra.mxu0 0.0
      %428 = vmatpush.msra.mxu0 0.0
      %429 = vmatpush.msra.mxu0 0.0
      %430 = vmatpush.msra.mxu0 0.0
      %431 = vmatpush.msra.mxu0 0.0
      %432 = vmatpush.msra.mxu0 %v423
      %433 = vmatpush.msra.mxu0 %v420
      %434 = vmatpush.msra.mxu0 %v417
      %435 = vmatpush.msra.mxu0 %v389
      %436 = vmatpush.msra.mxu0 %v386
      %437 = vmatpush.msra.mxu0 %v383
      %438 = vmatpush.msra.mxu0 %v355
      %439 = vmatpush.msra.mxu0 %v352
      %440 = vmatpush.msra.mxu0 %v349
      %441 = vmatmul.f32.gmra.mxu0 %v253
      %v442 = vpop.f32.mrf.mxu0
      %v443 = vadd.f32 0.0, %v442
      %444 = vdwg.mxu0
      %v445 = vadd.f32 %v217, %v443
      %s446 = scalar_lea.vmem %s209, 40
      %447 = vst.msk [vmem:[%s446] sm:$0xff] %vm276, %v445
      %s448 = sadd.s32 %s211, 8
      %s449 = smul.u32 %s448, 8
      %s450 = scalar_lea.vmem %s200, %s449
      %v451 = vld [vmem:[%s450] sm:$0xff]
      %453 = vrot.lane.b32.xlu0 %v451, 127
      %v454 = vpop.permute.xlu0 %453
      %456 = vrot.lane.b32.xlu0 %v451, 126
      %v457 = vpop.permute.xlu0 %456
      %459 = vmatpush.msra.mxu0 0.0
      %460 = vmatpush.msra.mxu0 0.0
      %461 = vmatpush.msra.mxu0 0.0
      %462 = vmatpush.msra.mxu0 0.0
      %463 = vmatpush.msra.mxu0 0.0
      %464 = vmatpush.msra.mxu0 0.0
      %465 = vmatpush.msra.mxu0 0.0
      %466 = vmatpush.msra.mxu0 %v457
      %467 = vmatpush.msra.mxu0 %v454
      %468 = vmatpush.msra.mxu0 %v451
      %469 = vmatpush.msra.mxu0 %v423
      %470 = vmatpush.msra.mxu0 %v420
      %471 = vmatpush.msra.mxu0 %v417
      %472 = vmatpush.msra.mxu0 %v389
      %473 = vmatpush.msra.mxu0 %v386
      %474 = vmatpush.msra.mxu0 %v383
      %475 = vmatmul.f32.gmra.mxu0 %v253
      %v476 = vpop.f32.mrf.mxu0
      %v477 = vadd.f32 0.0, %v476
      %478 = vdwg.mxu0
      %v479 = vadd.f32 %v217, %v477
      %s480 = scalar_lea.vmem %s209, 48
      %481 = vst.msk [vmem:[%s480] sm:$0xff] %vm276, %v479
      %s482 = sadd.s32 %s211, 9
      %s483 = smul.u32 %s482, 8
      %s484 = scalar_lea.vmem %s200, %s483
      %v485 = vld [vmem:[%s484] sm:$0xff]
      %487 = vrot.lane.b32.xlu0 %v485, 127
      %v488 = vpop.permute.xlu0 %487
      %490 = vrot.lane.b32.xlu0 %v485, 126
      %v491 = vpop.permute.xlu0 %490
      %493 = vmatpush.msra.mxu0 0.0
      %494 = vmatpush.msra.mxu0 0.0
      %495 = vmatpush.msra.mxu0 0.0
      %496 = vmatpush.msra.mxu0 0.0
      %497 = vmatpush.msra.mxu0 0.0
      %498 = vmatpush.msra.mxu0 0.0
      %499 = vmatpush.msra.mxu0 0.0
      %500 = vmatpush.msra.mxu0 %v491
      %501 = vmatpush.msra.mxu0 %v488
      %502 = vmatpush.msra.mxu0 %v485
      %503 = vmatpush.msra.mxu0 %v457
      %504 = vmatpush.msra.mxu0 %v454
      %505 = vmatpush.msra.mxu0 %v451
      %506 = vmatpush.msra.mxu0 %v423
      %507 = vmatpush.msra.mxu0 %v420
      %508 = vmatpush.msra.mxu0 %v417
      %509 = vmatmul.f32.gmra.mxu0 %v253
      %v510 = vpop.f32.mrf.mxu0
      %v511 = vadd.f32 0.0, %v510
      %512 = vdwg.mxu0
      %v513 = vadd.f32 %v217, %v511
      %s514 = scalar_lea.vmem %s209, 56
      %515 = vst.msk [vmem:[%s514] sm:$0xff] %vm276, %v513
      %s516 = sadd.s32 %s211, 10
      %s517 = smul.u32 %s516, 8
      %s518 = scalar_lea.vmem %s200, %s517
      %v519 = vld [vmem:[%s518] sm:$0xff]
      %521 = vrot.lane.b32.xlu0 %v519, 127
      %v522 = vpop.permute.xlu0 %521
      %524 = vrot.lane.b32.xlu0 %v519, 126
      %v525 = vpop.permute.xlu0 %524
      %527 = vmatpush.msra.mxu0 0.0
      %528 = vmatpush.msra.mxu0 0.0
      %529 = vmatpush.msra.mxu0 0.0
      %530 = vmatpush.msra.mxu0 0.0
      %531 = vmatpush.msra.mxu0 0.0
      %532 = vmatpush.msra.mxu0 0.0
      %533 = vmatpush.msra.mxu0 0.0
      %534 = vmatpush.msra.mxu0 %v525
      %535 = vmatpush.msra.mxu0 %v522
      %536 = vmatpush.msra.mxu0 %v519
      %537 = vmatpush.msra.mxu0 %v491
      %538 = vmatpush.msra.mxu0 %v488
      %539 = vmatpush.msra.mxu0 %v485
      %540 = vmatpush.msra.mxu0 %v457
      %541 = vmatpush.msra.mxu0 %v454
      %542 = vmatpush.msra.mxu0 %v451
      %543 = vmatmul.f32.gmra.mxu0 %v253
      %v544 = vpop.f32.mrf.mxu0
      %v545 = vadd.f32 0.0, %v544
      %546 = vdwg.mxu0
      %v547 = vadd.f32 %v217, %v545
      %s548 = scalar_lea.vmem %s209, 64
      %549 = vst.msk [vmem:[%s548] sm:$0xff] %vm276, %v547
      %s550 = sadd.s32 %s211, 11
      %s551 = smul.u32 %s550, 8
      %s552 = scalar_lea.vmem %s200, %s551
      %v553 = vld [vmem:[%s552] sm:$0xff]
      %555 = vrot.lane.b32.xlu0 %v553, 127
      %v556 = vpop.permute.xlu0 %555
      %558 = vrot.lane.b32.xlu0 %v553, 126
      %v559 = vpop.permute.xlu0 %558
      %561 = vmatpush.msra.mxu0 0.0
      %562 = vmatpush.msra.mxu0 0.0
      %563 = vmatpush.msra.mxu0 0.0
      %564 = vmatpush.msra.mxu0 0.0
      %565 = vmatpush.msra.mxu0 0.0
      %566 = vmatpush.msra.mxu0 0.0
      %567 = vmatpush.msra.mxu0 0.0
      %568 = vmatpush.msra.mxu0 %v559
      %569 = vmatpush.msra.mxu0 %v556
      %570 = vmatpush.msra.mxu0 %v553
      %571 = vmatpush.msra.mxu0 %v525
      %572 = vmatpush.msra.mxu0 %v522
      %573 = vmatpush.msra.mxu0 %v519
      %574 = vmatpush.msra.mxu0 %v491
      %575 = vmatpush.msra.mxu0 %v488
      %576 = vmatpush.msra.mxu0 %v485
      %577 = vmatmul.f32.gmra.mxu0 %v253
      %v578 = vpop.f32.mrf.mxu0
      %v579 = vadd.f32 0.0, %v578
      %580 = vdwg.mxu0
      %v581 = vadd.f32 %v217, %v579
      %s582 = scalar_lea.vmem %s209, 72
      %583 = vst.msk [vmem:[%s582] sm:$0xff] %vm276, %v581
      %s584 = sadd.s32 %s211, 12
      %s585 = smul.u32 %s584, 8
      %s586 = scalar_lea.vmem %s200, %s585
      %v587 = vld [vmem:[%s586] sm:$0xff]
      %589 = vrot.lane.b32.xlu0 %v587, 127
      %v590 = vpop.permute.xlu0 %589
      %592 = vrot.lane.b32.xlu0 %v587, 126
      %v593 = vpop.permute.xlu0 %592
      %595 = vmatpush.msra.mxu0 0.0
      %596 = vmatpush.msra.mxu0 0.0
      %597 = vmatpush.msra.mxu0 0.0
      %598 = vmatpush.msra.mxu0 0.0
      %599 = vmatpush.msra.mxu0 0.0
      %600 = vmatpush.msra.mxu0 0.0
      %601 = vmatpush.msra.mxu0 0.0
      %602 = vmatpush.msra.mxu0 %v593
      %603 = vmatpush.msra.mxu0 %v590
      %604 = vmatpush.msra.mxu0 %v587
      %605 = vmatpush.msra.mxu0 %v559
      %606 = vmatpush.msra.mxu0 %v556
      %607 = vmatpush.msra.mxu0 %v553
      %608 = vmatpush.msra.mxu0 %v525
      %609 = vmatpush.msra.mxu0 %v522
      %610 = vmatpush.msra.mxu0 %v519
      %611 = vmatmul.f32.gmra.mxu0 %v253
      %v612 = vpop.f32.mrf.mxu0
      %v613 = vadd.f32 0.0, %v612
      %614 = vdwg.mxu0
      %v615 = vadd.f32 %v217, %v613
      %s616 = scalar_lea.vmem %s209, 80
      %617 = vst.msk [vmem:[%s616] sm:$0xff] %vm276, %v615
      %s618 = sadd.s32 %s211, 13
      %s619 = smul.u32 %s618, 8
      %s620 = scalar_lea.vmem %s200, %s619
      %v621 = vld [vmem:[%s620] sm:$0xff]
      %623 = vrot.lane.b32.xlu0 %v621, 127
      %v624 = vpop.permute.xlu0 %623
      %626 = vrot.lane.b32.xlu0 %v621, 126
      %v627 = vpop.permute.xlu0 %626
      %629 = vmatpush.msra.mxu0 0.0
      %630 = vmatpush.msra.mxu0 0.0
      %631 = vmatpush.msra.mxu0 0.0
      %632 = vmatpush.msra.mxu0 0.0
      %633 = vmatpush.msra.mxu0 0.0
      %634 = vmatpush.msra.mxu0 0.0
      %635 = vmatpush.msra.mxu0 0.0
      %636 = vmatpush.msra.mxu0 %v627
      %637 = vmatpush.msra.mxu0 %v624
      %638 = vmatpush.msra.mxu0 %v621
      %639 = vmatpush.msra.mxu0 %v593
      %640 = vmatpush.msra.mxu0 %v590
      %641 = vmatpush.msra.mxu0 %v587
      %642 = vmatpush.msra.mxu0 %v559
      %643 = vmatpush.msra.mxu0 %v556
      %644 = vmatpush.msra.mxu0 %v553
      %645 = vmatmul.f32.gmra.mxu0 %v253
      %v646 = vpop.f32.mrf.mxu0
      %v647 = vadd.f32 0.0, %v646
      %648 = vdwg.mxu0
      %v649 = vadd.f32 %v217, %v647
      %s650 = scalar_lea.vmem %s209, 88
      %651 = vst.msk [vmem:[%s650] sm:$0xff] %vm276, %v649
      %s652 = sadd.s32 %s211, 14
      %s653 = smul.u32 %s652, 8
      %s654 = scalar_lea.vmem %s200, %s653
      %v655 = vld [vmem:[%s654] sm:$0xff]
      %657 = vrot.lane.b32.xlu0 %v655, 127
      %v658 = vpop.permute.xlu0 %657
      %660 = vrot.lane.b32.xlu0 %v655, 126
      %v661 = vpop.permute.xlu0 %660
      %663 = vmatpush.msra.mxu0 0.0
      %664 = vmatpush.msra.mxu0 0.0
      %665 = vmatpush.msra.mxu0 0.0
      %666 = vmatpush.msra.mxu0 0.0
      %667 = vmatpush.msra.mxu0 0.0
      %668 = vmatpush.msra.mxu0 0.0
      %669 = vmatpush.msra.mxu0 0.0
      %670 = vmatpush.msra.mxu0 %v661
      %671 = vmatpush.msra.mxu0 %v658
      %672 = vmatpush.msra.mxu0 %v655
      %673 = vmatpush.msra.mxu0 %v627
      %674 = vmatpush.msra.mxu0 %v624
      %675 = vmatpush.msra.mxu0 %v621
      %676 = vmatpush.msra.mxu0 %v593
      %677 = vmatpush.msra.mxu0 %v590
      %678 = vmatpush.msra.mxu0 %v587
      %679 = vmatmul.f32.gmra.mxu0 %v253
      %v680 = vpop.f32.mrf.mxu0
      %v681 = vadd.f32 0.0, %v680
      %682 = vdwg.mxu0
      %v683 = vadd.f32 %v217, %v681
      %s684 = scalar_lea.vmem %s209, 96
      %685 = vst.msk [vmem:[%s684] sm:$0xff] %vm276, %v683
      %s686 = sadd.s32 %s211, 15
      %s687 = smul.u32 %s686, 8
      %s688 = scalar_lea.vmem %s200, %s687
      %v689 = vld [vmem:[%s688] sm:$0xff]
      %691 = vrot.lane.b32.xlu0 %v689, 127
      %v692 = vpop.permute.xlu0 %691
      %694 = vrot.lane.b32.xlu0 %v689, 126
      %v695 = vpop.permute.xlu0 %694
      %697 = vmatpush.msra.mxu0 0.0
      %698 = vmatpush.msra.mxu0 0.0
      %699 = vmatpush.msra.mxu0 0.0
      %700 = vmatpush.msra.mxu0 0.0
      %701 = vmatpush.msra.mxu0 0.0
      %702 = vmatpush.msra.mxu0 0.0
      %703 = vmatpush.msra.mxu0 0.0
      %704 = vmatpush.msra.mxu0 %v695
      %705 = vmatpush.msra.mxu0 %v692
      %706 = vmatpush.msra.mxu0 %v689
      %707 = vmatpush.msra.mxu0 %v661
      %708 = vmatpush.msra.mxu0 %v658
      %709 = vmatpush.msra.mxu0 %v655
      %710 = vmatpush.msra.mxu0 %v627
      %711 = vmatpush.msra.mxu0 %v624
      %712 = vmatpush.msra.mxu0 %v621
      %713 = vmatmul.f32.gmra.mxu0 %v253
      %v714 = vpop.f32.mrf.mxu0
      %v715 = vadd.f32 0.0, %v714
      %716 = vdwg.mxu0
      %v717 = vadd.f32 %v217, %v715
      %s718 = scalar_lea.vmem %s209, 104
      %719 = vst.msk [vmem:[%s718] sm:$0xff] %vm276, %v717
      %s720 = sadd.s32 %s211, 16
      %s721 = smul.u32 %s720, 8
      %s722 = scalar_lea.vmem %s200, %s721
      %v723 = vld [vmem:[%s722] sm:$0xff]
      %725 = vrot.lane.b32.xlu0 %v723, 127
      %v726 = vpop.permute.xlu0 %725
      %728 = vrot.lane.b32.xlu0 %v723, 126
      %v729 = vpop.permute.xlu0 %728
      %731 = vmatpush.msra.mxu0 0.0
      %732 = vmatpush.msra.mxu0 0.0
      %733 = vmatpush.msra.mxu0 0.0
      %734 = vmatpush.msra.mxu0 0.0
      %735 = vmatpush.msra.mxu0 0.0
      %736 = vmatpush.msra.mxu0 0.0
      %737 = vmatpush.msra.mxu0 0.0
      %738 = vmatpush.msra.mxu0 %v729
      %739 = vmatpush.msra.mxu0 %v726
      %740 = vmatpush.msra.mxu0 %v723
      %741 = vmatpush.msra.mxu0 %v695
      %742 = vmatpush.msra.mxu0 %v692
      %743 = vmatpush.msra.mxu0 %v689
      %744 = vmatpush.msra.mxu0 %v661
      %745 = vmatpush.msra.mxu0 %v658
      %746 = vmatpush.msra.mxu0 %v655
      %747 = vmatmul.f32.gmra.mxu0 %v253
      %v748 = vpop.f32.mrf.mxu0
      %v749 = vadd.f32 0.0, %v748
      %750 = vdwg.mxu0
      %v751 = vadd.f32 %v217, %v749
      %s752 = scalar_lea.vmem %s209, 112
      %753 = vst.msk [vmem:[%s752] sm:$0xff] %vm276, %v751
      %s754 = sadd.s32 %s211, 17
      %s755 = smul.u32 %s754, 8
      %s756 = scalar_lea.vmem %s200, %s755
      %v757 = vld [vmem:[%s756] sm:$0xff]
      %759 = vrot.lane.b32.xlu0 %v757, 127
      %v760 = vpop.permute.xlu0 %759
      %762 = vrot.lane.b32.xlu0 %v757, 126
      %v763 = vpop.permute.xlu0 %762
      %765 = vmatpush.msra.mxu0 0.0
      %766 = vmatpush.msra.mxu0 0.0
      %767 = vmatpush.msra.mxu0 0.0
      %768 = vmatpush.msra.mxu0 0.0
      %769 = vmatpush.msra.mxu0 0.0
      %770 = vmatpush.msra.mxu0 0.0
      %771 = vmatpush.msra.mxu0 0.0
      %772 = vmatpush.msra.mxu0 %v763
      %773 = vmatpush.msra.mxu0 %v760
      %774 = vmatpush.msra.mxu0 %v757
      %775 = vmatpush.msra.mxu0 %v729
      %776 = vmatpush.msra.mxu0 %v726
      %777 = vmatpush.msra.mxu0 %v723
      %778 = vmatpush.msra.mxu0 %v695
      %779 = vmatpush.msra.mxu0 %v692
      %780 = vmatpush.msra.mxu0 %v689
      %781 = vmatmul.f32.gmra.mxu0 %v253
      %v782 = vpop.f32.mrf.mxu0
      %v783 = vadd.f32 0.0, %v782
      %784 = vdwg.mxu0
      %v785 = vadd.f32 %v217, %v783
      %s786 = scalar_lea.vmem %s209, 120
      %787 = vst.msk [vmem:[%s786] sm:$0xff] %vm276, %v785
      %s788 = smul.u32 16, %s19
      %p789 = scmp.lt.s32.totalorder %s18, 1
      %s790 = scalar_select %p789, %s18, 1
      %p791 = scmp.lt.s32.totalorder %s788, 15
      %s792 = scalar_select %p791, %s788, 15
      %s793 = smul.addr %s790, 16
      %s794 = sadd.s32 %s792, %s793
      %s795 = smul.addr %s794, 8
      %s796 = scalar_lea.vmem %s3, %s795
      // Predicated region
      $region33: #{_lambda_.3} parent=31 // pred_check
        %p797 = pneg %p119
      $region34: #{_lambda_.3} parent=31 // pred_check_branch
        %799 = sbr.rel (%p797) target = $region36
      $region35: #{_lambda_.3} parent=31 // pred_region
        %s800 = smul.u32 16, %s19
      $region36: #{_lambda_.3} parent=31 // pred_fallthru
        _
    $region32: #{_lambda_.3} parent=5 // pred_fallthru
      _
    %p801 = scmp.le.s32.totalorder 2, %s9
    // Predicated region
    $region37: #{_lambda_.3} parent=5 // pred_check
      %p802 = pneg %p801
    $region38: #{_lambda_.3} parent=5 // pred_check_branch
      %804 = sbr.rel (%p802) target = $region40
    $region39: #{_lambda_.3} parent=5 // pred_region
      %s805 = ssub.s32 %s9, 2
      // Predicated region
      $region41: #{_lambda_.3} parent=39 // pred_check
        %p806 = pneg %p125
      $region42: #{_lambda_.3} parent=39 // pred_check_branch
        %808 = sbr.rel (%p806) target = $region44
      $region43: #{_lambda_.3} parent=39 // pred_region
        %s809 = smul.u32 16, %s21
        %p810 = scmp.lt.s32.totalorder %s20, 1
        %s811 = scalar_select %p810, %s20, 1
        %p812 = scmp.lt.s32.totalorder %s809, 15
        %s813 = scalar_select %p812, %s809, 15
        %s814 = smul.addr %s811, 16
        %s815 = sadd.s32 %s813, %s814
        %s816 = smul.addr %s815, 8
        %s817 = scalar_lea.vmem %s3, %s816
      $region44: #{_lambda_.3} parent=39 // pred_fallthru
        _
    $region40: #{_lambda_.3} parent=5 // pred_fallthru
      _
  $region6: #{_lambda_.3} parent=0 // loop_footer
    %s13 = sadd.s32 1, %s9
  $region7: #{_lambda_.3} parent=0 // loop_footer_branch
    %8 = sbr.rel target = $region3
  $region8: #{_lambda_.3} parent=0 // loop_exit
    _

</llo_original>
